<compile_context>
chip_gen: v6e
topology: v6e:2x2x1
jax: 0.10.0
libtpu: 0.0.40
codegen_flags: <defaults>
</compile_context>

<pallas_src>
import functools

import jax
import jax.numpy as jnp
from jax import lax
from jax.experimental import pallas as pl
from jax.experimental.pallas import tpu as pltpu


_EPS = 1e-5


def _vmem_limit_bytes():
    """Per-generation VMEM limit: half of physical capacity (review: don't
    hard-code 32 MiB; v5e/v6e have 128 MiB, v7x only 64 MiB)."""
    try:
        cap = int(pltpu.get_tpu_info().vmem_capacity_bytes)
    except Exception:
        cap = 64 * 1024 * 1024          # conservative (v7x physical VMEM)
    return max(32 * 1024 * 1024, cap // 2)


def _pick_batch_block(n, per_image_bytes, budget_bytes, min_steps=4):
    """Largest batch block dividing n that fits the VMEM budget while keeping
    >= min_steps grid steps (>= 2 per TensorCore on v7x) when n allows."""
    eff_min = min(min_steps, n)
    best = 1
    for nb in range(1, n + 1):
        if n % nb:
            continue
        if nb * per_image_bytes > budget_bytes:
            continue
        if n // nb >= eff_min:
            best = nb
    return best


# ----------------------------------------------------------------------------
# Kernel A: per-batch-block partial BN2 statistics of
#   y = w1t @ relu(x*s1 + b1)         (channel-major, spatial on lanes)
# Emits per block:  stats[., c, 0] = sum_y[c],  stats[., c, 1] = sum((y-m)^2)
# where m is the per-block mean (centered sums -> robust variance combine).
# ----------------------------------------------------------------------------
def _bn2_stats_kernel(x_ref, s1_ref, b1_ref, w1t_ref, stats_ref):
    nb, _, hw = x_ref.shape
    cmid = w1t_ref.shape[0]

    w1t = w1t_ref[...]
    s1 = s1_ref[...]
    b1 = b1_ref[...]

    ys = []
    ysum = jnp.zeros((cmid, 1), jnp.float32)
    for bi in range(nb):
        a1 = jnp.maximum(x_ref[bi] * s1 + b1, 0.0)            # (Cin, HW)
        y = jnp.dot(w1t, a1, preferred_element_type=jnp.float32)  # (Cmid, HW)
        ys.append(y)
        ysum = ysum + jnp.sum(y, axis=1, keepdims=True)

    m = ysum * (1.0 / (nb * hw))                               # block mean
    ss = jnp.zeros((cmid, 1), jnp.float32)
    for y in ys:
        d = y - m
        ss = ss + jnp.sum(d * d, axis=1, keepdims=True)

    stats_ref[0, :, 0:1] = ysum
    stats_ref[0, :, 1:2] = ss


def bn2_partial_stats(x, s1, b1, w1t, *, nb, vmem_limit):
    n, cin, hw = x.shape
    cmid = w1t.shape[0]
    nt = n // nb
    return pl.pallas_call(
        _bn2_stats_kernel,
        out_shape=jax.ShapeDtypeStruct((nt, cmid, 2), jnp.float32),
        grid=(nt,),
        in_specs=[
            pl.BlockSpec((nb, cin, hw), lambda i: (i, 0, 0)),
            pl.BlockSpec((cin, 1), lambda i: (0, 0)),          # resident
            pl.BlockSpec((cin, 1), lambda i: (0, 0)),
            pl.BlockSpec((cmid, cin), lambda i: (0, 0)),
        ],
        out_specs=pl.BlockSpec((1, cmid, 2), lambda i: (i, 0, 0)),
        compiler_params=pltpu.CompilerParams(
            dimension_semantics=("parallel",),
            vmem_limit_bytes=vmem_limit),
    )(x, s1, b1, w1t)


# ----------------------------------------------------------------------------
# Kernel B: fused  BN1+ReLU+1x1conv -> BN2+ReLU+3x3conv(pad=1) -> concat.
#   x:     (N, Cin, HW)    channel-major, spatial flattened onto lanes
#   s1,b1: (Cin, 1)  s2,b2: (Cmid, 1)     folded batch-norms
#   w1t:   (Cmid, Cin)
#   w2f:   (G, 9*Cmid)     w2f[g, t*Cmid + c] = w2[t, c, g],  t = kh*3 + kw
#   mask:  (9, HW)         zero-padding validity mask per 3x3 tap
#   out:   (N, Cin+G, HW)  [:, :Cin] = x (concat),  [:, Cin:] = conv output
# The 3x3 conv is one (G, 9*Cmid) @ (9*Cmid, HW) MXU matmul over an im2col
# slab assembled from lane rotations (pltpu.roll, XLU) + boundary masks.
# ----------------------------------------------------------------------------
def _fused_block_kernel(x_ref, s1_ref, b1_ref, w1t_ref, s2_ref, b2_ref,
                        w2f_ref, mask_ref, o_ref, *, width):
    nb, cin, hw = x_ref.shape
    g = w2f_ref.shape[0]

    w1t = w1t_ref[...]
    w2f = w2f_ref[...]
    s1 = s1_ref[...]
    b1 = b1_ref[...]
    s2 = s2_ref[...]
    b2 = b2_ref[...]
    masks = [mask_ref[t:t + 1, :] for t in range(9)]           # each (1, HW)

    for bi in range(nb):
        xb = x_ref[bi]                                         # (Cin, HW)

        # Bottleneck recompute, entirely in VMEM/registers.
        a1 = jnp.maximum(xb * s1 + b1, 0.0)
        y = jnp.dot(w1t, a1, preferred_element_type=jnp.float32)   # (Cmid, HW)
        a2 = jnp.maximum(y * s2 + b2, 0.0)

        # im2col slab: 8 lane rotations (XLU) + boundary masks, stacked on
        # the sublane axis (each piece is 8-row aligned -> cheap concat).
        pieces = []
        for t in range(9):
            kh, kw = divmod(t, 3)
            d = (kh - 1) * width + (kw - 1)                    # flat shift
            sh = (-d) % hw
            v = a2 if sh == 0 else pltpu.roll(a2, sh, axis=1)  # v[p]=a2[p+d]
            pieces.append(v * masks[t])
        slab = jnp.concatenate(pieces, axis=0)                 # (9*Cmid, HW)

        # Single MXU contraction, register-level result (no scratch).
        conv = jnp.dot(w2f, slab, preferred_element_type=jnp.float32)  # (G,HW)

        # Fused channel concat: lane-dense (HW-wide) stores.
        o_ref[bi, 0:cin, :] = xb.astype(o_ref.dtype)
        o_ref[bi, cin:cin + g, :] = conv.astype(o_ref.dtype)


def fused_block(x, s1, b1, w1t, s2, b2, w2f, masks, *, width, nb, vmem_limit):
    n, cin, hw = x.shape
    cmid = w1t.shape[0]
    g = w2f.shape[0]
    nt = n // nb
    return pl.pallas_call(
        functools.partial(_fused_block_kernel, width=width),
        out_shape=jax.ShapeDtypeStruct((n, cin + g, hw), x.dtype),
        grid=(nt,),
        in_specs=[
            pl.BlockSpec((nb, cin, hw), lambda i: (i, 0, 0)),
            pl.BlockSpec((cin, 1), lambda i: (0, 0)),          # resident
            pl.BlockSpec((cin, 1), lambda i: (0, 0)),
            pl.BlockSpec((cmid, cin), lambda i: (0, 0)),
            pl.BlockSpec((cmid, 1), lambda i: (0, 0)),
            pl.BlockSpec((cmid, 1), lambda i: (0, 0)),
            pl.BlockSpec((g, 9 * cmid), lambda i: (0, 0)),
            pl.BlockSpec((9, hw), lambda i: (0, 0)),
        ],
        out_specs=pl.BlockSpec((nb, cin + g, hw), lambda i: (i, 0, 0)),
        compiler_params=pltpu.CompilerParams(
            dimension_semantics=("parallel",),
            vmem_limit_bytes=vmem_limit),
    )(x, s1, b1, w1t, s2, b2, w2f, masks)


# ----------------------------------------------------------------------------
# Glue: fold training-mode batch-norm stats into scale/bias, call kernels.
# ----------------------------------------------------------------------------
def _shift_masks(h, w):
    hw = h * w
    idx = jnp.arange(hw, dtype=jnp.int32)
    hh = idx // w
    ww = idx % w
    rows = []
    for kh in range(3):
        for kw in range(3):
            dh, dw = kh - 1, kw - 1
            valid = ((hh + dh >= 0) & (hh + dh < h) &
                     (ww + dw >= 0) & (ww + dw < w))
            rows.append(valid.astype(jnp.float32))
    return jnp.stack(rows, axis=0)                             # (9, HW)


@jax.jit
def densenet_basic_block(x_nchw, params):
    gamma1, beta1, w1, gamma2, beta2, w2 = params
    N, Cin, H, W = x_nchw.shape
    Cmid = w1.shape[1]
    G = w2.shape[2]
    HW = H * W
    M = N * HW

    x = x_nchw.reshape(N, Cin, HW)                 # metadata-only (no transpose)

    vmem_limit = _vmem_limit_bytes()
    per_image = 4 * HW * (2 * Cin + 2 * (Cin + G) + 11 * Cmid + G)
    nb = _pick_batch_block(N, per_image, vmem_limit // 2, min_steps=4)

    # BN1 (training-mode batch stats, biased variance) folded to scale/bias.
    mean1 = jnp.mean(x, axis=(0, 2))
    var1 = jnp.var(x, axis=(0, 2))
    inv1 = gamma1 / jnp.sqrt(var1 + _EPS)
    s1 = inv1.reshape(Cin, 1)
    b1 = (beta1 - mean1 * inv1).reshape(Cin, 1)

    w1t = w1.T                                               # (Cmid, Cin)

    # Kernel A: per-block centered partial sums of y (no HBM round-trip of y).
    stats = bn2_partial_stats(x, s1, b1, w1t, nb=nb, vmem_limit=vmem_limit)
    sum_t = stats[:, :, 0]                                   # (nt, Cmid)
    ss_t = stats[:, :, 1]
    n_t = nb * HW
    mean2 = jnp.sum(sum_t, axis=0) / M
    m_t = sum_t / n_t
    # Chan's parallel-variance combine (robust; no E[y^2]-E[y]^2 cancellation).
    m2 = jnp.sum(ss_t, axis=0) + n_t * jnp.sum((m_t - mean2[None, :]) ** 2,
                                               axis=0)
    var2 = jnp.maximum(m2 / M, 0.0)
    inv2 = gamma2 / jnp.sqrt(var2 + _EPS)
    s2 = inv2.reshape(Cmid, 1)
    b2 = (beta2 - mean2 * inv2).reshape(Cmid, 1)

    # 3x3 weights flattened tap-major to (G, 9*Cmid); boundary masks (9, HW).
    w2f = jnp.transpose(w2, (2, 0, 1)).reshape(G, 9 * Cmid)
    masks = _shift_masks(H, W)

    # Kernel B: fully fused block, writes [x, conv3x3(...)] channel concat.
    out = fused_block(x, s1, b1, w1t, s2, b2, w2f, masks,
                      width=W, nb=nb, vmem_limit=vmem_limit)
    return out.reshape(N, Cin + G, H, W)                     # metadata-only


# ----------------------------------------------------------------------------
# Pure-JAX reference (mirrors the PyTorch forward, NCHW) for verification.
# ----------------------------------------------------------------------------
def reference(x_nchw, params):
    gamma1, beta1, w1, gamma2, beta2, w2 = params
    Cin, Cmid = w1.shape
    G = w2.shape[2]

    def bn(x, gamma, beta):
        mean = x.mean(axis=(0, 2, 3), keepdims=True)
        var = x.var(axis=(0, 2, 3), keepdims=True)
        return ((x - mean) / jnp.sqrt(var + _EPS)
                * gamma.reshape(1, -1, 1, 1) + beta.reshape(1, -1, 1, 1))

    h = jax.nn.relu(bn(x_nchw, gamma1, beta1))
    w1_oihw = w1.T.reshape(Cmid, Cin, 1, 1)
    h = lax.conv_general_dilated(h, w1_oihw, (1, 1), "VALID",
                                 dimension_numbers=("NCHW", "OIHW", "NCHW"))
    h = jax.nn.relu(bn(h, gamma2, beta2))
    w2_oihw = w2.reshape(3, 3, Cmid, G).transpose(3, 2, 0, 1)
    h = lax.conv_general_dilated(h, w2_oihw, (1, 1), "SAME",
                                 dimension_numbers=("NCHW", "OIHW", "NCHW"))
    return jnp.concatenate([x_nchw, h], axis=1)


if __name__ == "__main__":
    # Module config: in_planes=4, growth_rate=4, bottleneck=True -> Cmid=16.
    N, Cin, H, W = 2, 4, 16, 16
    growth = 4
    Cmid = 4 * growth

    key = jax.random.PRNGKey(0)
    kx, k1, k2, k3, k4, k5, k6 = jax.random.split(key, 7)

    x = jax.random.normal(kx, (N, Cin, H, W), dtype=jnp.float32)

    gamma1 = 1.0 + 0.1 * jax.random.normal(k1, (Cin,), dtype=jnp.float32)
    beta1 = 0.1 * jax.random.normal(k2, (Cin,), dtype=jnp.float32)
    w1 = 0.3 * jax.random.normal(k3, (Cin, Cmid), dtype=jnp.float32)
    gamma2 = 1.0 + 0.1 * jax.random.normal(k4, (Cmid,), dtype=jnp.float32)
    beta2 = 0.1 * jax.random.normal(k5, (Cmid,), dtype=jnp.float32)
    w2 = 0.1 * jax.random.normal(k6, (9, Cmid, growth), dtype=jnp.float32)

    params = (gamma1, beta1, w1, gamma2, beta2, w2)

    out = densenet_basic_block(x, params)
    out = jax.block_until_ready(out)

    ref = jax.block_until_ready(reference(x, params))
    assert out.shape == (N, Cin + growth, H, W), out.shape
    assert jnp.allclose(out, ref, rtol=1e-4, atol=1e-4), (
        float(jnp.max(jnp.abs(out - ref))))

    print("KERNEL_OK")
</pallas_src>

<mosaic_0001>
module attributes {stable_mosaic.version = 11 : i64} {
  func.func @_bn2_stats_kernel(%arg0: i32, %arg1: memref<1x4x256xf32, #tpu.memory_space<vmem>>, %arg2: memref<4x1xf32, #tpu.memory_space<vmem>>, %arg3: memref<4x1xf32, #tpu.memory_space<vmem>>, %arg4: memref<16x4xf32, #tpu.memory_space<vmem>>, %arg5: memref<1x16x2xf32, #tpu.memory_space<vmem>>) attributes {dimension_semantics = [#tpu.dimension_semantics<parallel>], iteration_bounds = array<i64: 2>, scalar_prefetch = 0 : i64, scratch_operands = 0 : i64, tpu.core_type = #tpu.core_type<tc>, window_params = [{transform_indices = @transform_0, window_bounds = array<i64: 1, 4, 256>}, {pipeline_mode = #tpu.pipeline_mode<synchronous>, transform_indices = @transform_1, window_bounds = array<i64: 4, 1>}, {pipeline_mode = #tpu.pipeline_mode<synchronous>, transform_indices = @transform_2, window_bounds = array<i64: 4, 1>}, {pipeline_mode = #tpu.pipeline_mode<synchronous>, transform_indices = @transform_3, window_bounds = array<i64: 16, 4>}, {transform_indices = @transform_4, window_bounds = array<i64: 1, 16, 2>}]} {
    %c0 = arith.constant 0 : index
    %c0_0 = arith.constant 0 : index
    %0 = vector.load %arg4[%c0, %c0_0] : memref<16x4xf32, #tpu.memory_space<vmem>>, vector<16x4xf32>
    %c0_1 = arith.constant 0 : index
    %c0_2 = arith.constant 0 : index
    %1 = vector.load %arg2[%c0_1, %c0_2] : memref<4x1xf32, #tpu.memory_space<vmem>>, vector<4x1xf32>
    %c0_3 = arith.constant 0 : index
    %c0_4 = arith.constant 0 : index
    %2 = vector.load %arg3[%c0_3, %c0_4] : memref<4x1xf32, #tpu.memory_space<vmem>>, vector<4x1xf32>
    %cst = arith.constant 0.000000e+00 : f32
    %3 = vector.broadcast %cst : f32 to vector<16x1xf32>
    %c0_5 = arith.constant 0 : index
    %c0_6 = arith.constant 0 : index
    %c0_7 = arith.constant 0 : index
    %4 = vector.load %arg1[%c0_5, %c0_6, %c0_7] : memref<1x4x256xf32, #tpu.memory_space<vmem>>, vector<1x4x256xf32>
    %5 = vector.shape_cast %4 : vector<1x4x256xf32> to vector<4x256xf32>
    %6 = vector.broadcast %1 : vector<4x1xf32> to vector<4x256xf32>
    %7 = arith.mulf %5, %6 : vector<4x256xf32>
    %8 = vector.broadcast %2 : vector<4x1xf32> to vector<4x256xf32>
    %9 = arith.addf %7, %8 : vector<4x256xf32>
    %cst_8 = arith.constant 0.000000e+00 : f32
    %10 = vector.broadcast %cst_8 : f32 to vector<4x256xf32>
    %11 = arith.maximumf %9, %10 : vector<4x256xf32>
    %cst_9 = arith.constant dense<0.000000e+00> : vector<16x256xf32>
    %12 = tpu.matmul %0, %11, %cst_9 {dimension_numbers = #tpu.dot_dimension_numbers<[1], [0], [0], [1], [0, 0, 1, 1], [], []>} : vector<16x4xf32>, vector<4x256xf32>, vector<16x256xf32> -> vector<16x256xf32>
    %cst_10 = arith.constant dense<0.000000e+00> : vector<16xf32>
    %13 = vector.multi_reduction <add>, %12, %cst_10 [1] : vector<16x256xf32> to vector<16xf32>
    %14 = vector.shape_cast %13 : vector<16xf32> to vector<16x1xf32>
    %15 = arith.addf %3, %14 : vector<16x1xf32>
    %cst_11 = arith.constant 3.906250e-03 : f32
    %16 = vector.broadcast %cst_11 : f32 to vector<16x1xf32>
    %17 = arith.mulf %15, %16 : vector<16x1xf32>
    %cst_12 = arith.constant 0.000000e+00 : f32
    %18 = vector.broadcast %cst_12 : f32 to vector<16x1xf32>
    %19 = vector.broadcast %17 : vector<16x1xf32> to vector<16x256xf32>
    %20 = arith.subf %12, %19 : vector<16x256xf32>
    %21 = arith.mulf %20, %20 : vector<16x256xf32>
    %cst_13 = arith.constant dense<0.000000e+00> : vector<16xf32>
    %22 = vector.multi_reduction <add>, %21, %cst_13 [1] : vector<16x256xf32> to vector<16xf32>
    %23 = vector.shape_cast %22 : vector<16xf32> to vector<16x1xf32>
    %24 = arith.addf %18, %23 : vector<16x1xf32>
    %c0_14 = arith.constant 0 : index
    %c0_15 = arith.constant 0 : index
    %c0_16 = arith.constant 0 : index
    %25 = vector.load %arg5[%c0_14, %c0_15, %c0_16] : memref<1x16x2xf32, #tpu.memory_space<vmem>>, vector<1x16x1xf32>
    %26 = vector.shape_cast %25 : vector<1x16x1xf32> to vector<16x1xf32>
    %27 = vector.shape_cast %15 : vector<16x1xf32> to vector<1x16x1xf32>
    tpu.vector_store %arg5[%c0_14, %c0_15, %c0_16], %27 {strides = array<i32>} : memref<1x16x2xf32, #tpu.memory_space<vmem>>, vector<1x16x1xf32>,
    %c0_17 = arith.constant 0 : index
    %c0_18 = arith.constant 0 : index
    %c1 = arith.constant 1 : index
    %28 = vector.load %arg5[%c0_17, %c0_18, %c1] : memref<1x16x2xf32, #tpu.memory_space<vmem>>, vector<1x16x1xf32>
    %29 = vector.shape_cast %28 : vector<1x16x1xf32> to vector<16x1xf32>
    %30 = vector.shape_cast %24 : vector<16x1xf32> to vector<1x16x1xf32>
    tpu.vector_store %arg5[%c0_17, %c0_18, %c1], %30 {strides = array<i32>} : memref<1x16x2xf32, #tpu.memory_space<vmem>>, vector<1x16x1xf32>,
    return
  }
  func.func @transform_0(%arg0: i32) -> (i32, i32, i32) {
    %c0_i32 = arith.constant 0 : i32
    %c0_i32_0 = arith.constant 0 : i32
    %c0_i32_1 = arith.constant 0 : i32
    return %arg0, %c0_i32, %c0_i32_0 : i32, i32, i32
  }
  func.func @transform_1(%arg0: i32) -> (i32, i32) {
    %c0_i32 = arith.constant 0 : i32
    %c0_i32_0 = arith.constant 0 : i32
    %c0_i32_1 = arith.constant 0 : i32
    return %c0_i32, %c0_i32_0 : i32, i32
  }
  func.func @transform_2(%arg0: i32) -> (i32, i32) {
    %c0_i32 = arith.constant 0 : i32
    %c0_i32_0 = arith.constant 0 : i32
    %c0_i32_1 = arith.constant 0 : i32
    return %c0_i32, %c0_i32_0 : i32, i32
  }
  func.func @transform_3(%arg0: i32) -> (i32, i32) {
    %c0_i32 = arith.constant 0 : i32
    %c0_i32_0 = arith.constant 0 : i32
    %c0_i32_1 = arith.constant 0 : i32
    return %c0_i32, %c0_i32_0 : i32, i32
  }
  func.func @transform_4(%arg0: i32) -> (i32, i32, i32) {
    %c0_i32 = arith.constant 0 : i32
    %c0_i32_0 = arith.constant 0 : i32
    %c0_i32_1 = arith.constant 0 : i32
    return %arg0, %c0_i32, %c0_i32_0 : i32, i32, i32
  }
}

module attributes {stable_mosaic.version = 11 : i64} {
  func.func @_fused_block_kernel(%arg0: i32, %arg1: memref<1x4x256xf32, #tpu.memory_space<vmem>>, %arg2: memref<4x1xf32, #tpu.memory_space<vmem>>, %arg3: memref<4x1xf32, #tpu.memory_space<vmem>>, %arg4: memref<16x4xf32, #tpu.memory_space<vmem>>, %arg5: memref<16x1xf32, #tpu.memory_space<vmem>>, %arg6: memref<16x1xf32, #tpu.memory_space<vmem>>, %arg7: memref<4x144xf32, #tpu.memory_space<vmem>>, %arg8: memref<9x256xf32, #tpu.memory_space<vmem>>, %arg9: memref<1x8x256xf32, #tpu.memory_space<vmem>>) attributes {dimension_semantics = [#tpu.dimension_semantics<parallel>], iteration_bounds = array<i64: 2>, scalar_prefetch = 0 : i64, scratch_operands = 0 : i64, tpu.core_type = #tpu.core_type<tc>, window_params = [{transform_indices = @transform_0, window_bounds = array<i64: 1, 4, 256>}, {pipeline_mode = #tpu.pipeline_mode<synchronous>, transform_indices = @transform_1, window_bounds = array<i64: 4, 1>}, {pipeline_mode = #tpu.pipeline_mode<synchronous>, transform_indices = @transform_2, window_bounds = array<i64: 4, 1>}, {pipeline_mode = #tpu.pipeline_mode<synchronous>, transform_indices = @transform_3, window_bounds = array<i64: 16, 4>}, {pipeline_mode = #tpu.pipeline_mode<synchronous>, transform_indices = @transform_4, window_bounds = array<i64: 16, 1>}, {pipeline_mode = #tpu.pipeline_mode<synchronous>, transform_indices = @transform_5, window_bounds = array<i64: 16, 1>}, {pipeline_mode = #tpu.pipeline_mode<synchronous>, transform_indices = @transform_6, window_bounds = array<i64: 4, 144>}, {pipeline_mode = #tpu.pipeline_mode<synchronous>, transform_indices = @transform_7, window_bounds = array<i64: 9, 256>}, {transform_indices = @transform_8, window_bounds = array<i64: 1, 8, 256>}]} {
    %c0 = arith.constant 0 : index
    %c0_0 = arith.constant 0 : index
    %0 = vector.load %arg4[%c0, %c0_0] : memref<16x4xf32, #tpu.memory_space<vmem>>, vector<16x4xf32>
    %c0_1 = arith.constant 0 : index
    %c0_2 = arith.constant 0 : index
    %1 = vector.load %arg7[%c0_1, %c0_2] : memref<4x144xf32, #tpu.memory_space<vmem>>, vector<4x144xf32>
    %c0_3 = arith.constant 0 : index
    %c0_4 = arith.constant 0 : index
    %2 = vector.load %arg2[%c0_3, %c0_4] : memref<4x1xf32, #tpu.memory_space<vmem>>, vector<4x1xf32>
    %c0_5 = arith.constant 0 : index
    %c0_6 = arith.constant 0 : index
    %3 = vector.load %arg3[%c0_5, %c0_6] : memref<4x1xf32, #tpu.memory_space<vmem>>, vector<4x1xf32>
    %c0_7 = arith.constant 0 : index
    %c0_8 = arith.constant 0 : index
    %4 = vector.load %arg5[%c0_7, %c0_8] : memref<16x1xf32, #tpu.memory_space<vmem>>, vector<16x1xf32>
    %c0_9 = arith.constant 0 : index
    %c0_10 = arith.constant 0 : index
    %5 = vector.load %arg6[%c0_9, %c0_10] : memref<16x1xf32, #tpu.memory_space<vmem>>, vector<16x1xf32>
    %c0_11 = arith.constant 0 : index
    %c0_12 = arith.constant 0 : index
    %6 = vector.load %arg8[%c0_11, %c0_12] : memref<9x256xf32, #tpu.memory_space<vmem>>, vector<1x256xf32>
    %c1 = arith.constant 1 : index
    %c0_13 = arith.constant 0 : index
    %7 = vector.load %arg8[%c1, %c0_13] : memref<9x256xf32, #tpu.memory_space<vmem>>, vector<1x256xf32>
    %c2 = arith.constant 2 : index
    %c0_14 = arith.constant 0 : index
    %8 = vector.load %arg8[%c2, %c0_14] : memref<9x256xf32, #tpu.memory_space<vmem>>, vector<1x256xf32>
    %c3 = arith.constant 3 : index
    %c0_15 = arith.constant 0 : index
    %9 = vector.load %arg8[%c3, %c0_15] : memref<9x256xf32, #tpu.memory_space<vmem>>, vector<1x256xf32>
    %c4 = arith.constant 4 : index
    %c0_16 = arith.constant 0 : index
    %10 = vector.load %arg8[%c4, %c0_16] : memref<9x256xf32, #tpu.memory_space<vmem>>, vector<1x256xf32>
    %c5 = arith.constant 5 : index
    %c0_17 = arith.constant 0 : index
    %11 = vector.load %arg8[%c5, %c0_17] : memref<9x256xf32, #tpu.memory_space<vmem>>, vector<1x256xf32>
    %c6 = arith.constant 6 : index
    %c0_18 = arith.constant 0 : index
    %12 = vector.load %arg8[%c6, %c0_18] : memref<9x256xf32, #tpu.memory_space<vmem>>, vector<1x256xf32>
    %c7 = arith.constant 7 : index
    %c0_19 = arith.constant 0 : index
    %13 = vector.load %arg8[%c7, %c0_19] : memref<9x256xf32, #tpu.memory_space<vmem>>, vector<1x256xf32>
    %c8 = arith.constant 8 : index
    %c0_20 = arith.constant 0 : index
    %14 = vector.load %arg8[%c8, %c0_20] : memref<9x256xf32, #tpu.memory_space<vmem>>, vector<1x256xf32>
    %c0_21 = arith.constant 0 : index
    %c0_22 = arith.constant 0 : index
    %c0_23 = arith.constant 0 : index
    %15 = vector.load %arg1[%c0_21, %c0_22, %c0_23] : memref<1x4x256xf32, #tpu.memory_space<vmem>>, vector<1x4x256xf32>
    %16 = vector.shape_cast %15 : vector<1x4x256xf32> to vector<4x256xf32>
    %17 = vector.broadcast %2 : vector<4x1xf32> to vector<4x256xf32>
    %18 = arith.mulf %16, %17 : vector<4x256xf32>
    %19 = vector.broadcast %3 : vector<4x1xf32> to vector<4x256xf32>
    %20 = arith.addf %18, %19 : vector<4x256xf32>
    %cst = arith.constant 0.000000e+00 : f32
    %21 = vector.broadcast %cst : f32 to vector<4x256xf32>
    %22 = arith.maximumf %20, %21 : vector<4x256xf32>
    %cst_24 = arith.constant dense<0.000000e+00> : vector<16x256xf32>
    %23 = tpu.matmul %0, %22, %cst_24 {dimension_numbers = #tpu.dot_dimension_numbers<[1], [0], [0], [1], [0, 0, 1, 1], [], []>} : vector<16x4xf32>, vector<4x256xf32>, vector<16x256xf32> -> vector<16x256xf32>
    %24 = vector.broadcast %4 : vector<16x1xf32> to vector<16x256xf32>
    %25 = arith.mulf %23, %24 : vector<16x256xf32>
    %26 = vector.broadcast %5 : vector<16x1xf32> to vector<16x256xf32>
    %27 = arith.addf %25, %26 : vector<16x256xf32>
    %cst_25 = arith.constant 0.000000e+00 : f32
    %28 = vector.broadcast %cst_25 : f32 to vector<16x256xf32>
    %29 = arith.maximumf %27, %28 : vector<16x256xf32>
    %c17_i32 = arith.constant 17 : i32
    %30 = tpu.dynamic_rotate %29 by %c17_i32 dim 1 : vector<16x256xf32>, i32 -> vector<16x256xf32>
    %31 = vector.broadcast %6 : vector<1x256xf32> to vector<16x256xf32>
    %32 = arith.mulf %30, %31 : vector<16x256xf32>
    %c16_i32 = arith.constant 16 : i32
    %33 = tpu.dynamic_rotate %29 by %c16_i32 dim 1 : vector<16x256xf32>, i32 -> vector<16x256xf32>
    %34 = vector.broadcast %7 : vector<1x256xf32> to vector<16x256xf32>
    %35 = arith.mulf %33, %34 : vector<16x256xf32>
    %c15_i32 = arith.constant 15 : i32
    %36 = tpu.dynamic_rotate %29 by %c15_i32 dim 1 : vector<16x256xf32>, i32 -> vector<16x256xf32>
    %37 = vector.broadcast %8 : vector<1x256xf32> to vector<16x256xf32>
    %38 = arith.mulf %36, %37 : vector<16x256xf32>
    %c1_i32 = arith.constant 1 : i32
    %39 = tpu.dynamic_rotate %29 by %c1_i32 dim 1 : vector<16x256xf32>, i32 -> vector<16x256xf32>
    %40 = vector.broadcast %9 : vector<1x256xf32> to vector<16x256xf32>
    %41 = arith.mulf %39, %40 : vector<16x256xf32>
    %42 = vector.broadcast %10 : vector<1x256xf32> to vector<16x256xf32>
    %43 = arith.mulf %29, %42 : vector<16x256xf32>
    %c255_i32 = arith.constant 255 : i32
    %44 = tpu.dynamic_rotate %29 by %c255_i32 dim 1 : vector<16x256xf32>, i32 -> vector<16x256xf32>
    %45 = vector.broadcast %11 : vector<1x256xf32> to vector<16x256xf32>
    %46 = arith.mulf %44, %45 : vector<16x256xf32>
    %c241_i32 = arith.constant 241 : i32
    %47 = tpu.dynamic_rotate %29 by %c241_i32 dim 1 : vector<16x256xf32>, i32 -> vector<16x256xf32>
    %48 = vector.broadcast %12 : vector<1x256xf32> to vector<16x256xf32>
    %49 = arith.mulf %47, %48 : vector<16x256xf32>
    %c240_i32 = arith.constant 240 : i32
    %50 = tpu.dynamic_rotate %29 by %c240_i32 dim 1 : vector<16x256xf32>, i32 -> vector<16x256xf32>
    %51 = vector.broadcast %13 : vector<1x256xf32> to vector<16x256xf32>
    %52 = arith.mulf %50, %51 : vector<16x256xf32>
    %c239_i32 = arith.constant 239 : i32
    %53 = tpu.dynamic_rotate %29 by %c239_i32 dim 1 : vector<16x256xf32>, i32 -> vector<16x256xf32>
    %54 = vector.broadcast %14 : vector<1x256xf32> to vector<16x256xf32>
    %55 = arith.mulf %53, %54 : vector<16x256xf32>
    %56 = tpu.concatenate %32, %35, %38, %41, %43, %46, %49, %52, %55 in 0 : vector<16x256xf32>, vector<16x256xf32>, vector<16x256xf32>, vector<16x256xf32>, vector<16x256xf32>, vector<16x256xf32>, vector<16x256xf32>, vector<16x256xf32>, vector<16x256xf32> -> vector<144x256xf32>
    %cst_26 = arith.constant dense<0.000000e+00> : vector<4x256xf32>
    %57 = tpu.matmul %1, %56, %cst_26 {dimension_numbers = #tpu.dot_dimension_numbers<[1], [0], [0], [1], [0, 0, 1, 1], [], []>} : vector<4x144xf32>, vector<144x256xf32>, vector<4x256xf32> -> vector<4x256xf32>
    %c0_27 = arith.constant 0 : index
    %c0_28 = arith.constant 0 : index
    %c0_29 = arith.constant 0 : index
    %58 = vector.load %arg9[%c0_27, %c0_28, %c0_29] : memref<1x8x256xf32, #tpu.memory_space<vmem>>, vector<1x4x256xf32>
    %59 = vector.shape_cast %58 : vector<1x4x256xf32> to vector<4x256xf32>
    %60 = vector.shape_cast %16 : vector<4x256xf32> to vector<1x4x256xf32>
    tpu.vector_store %arg9[%c0_27, %c0_28, %c0_29], %60 {strides = array<i32>} : memref<1x8x256xf32, #tpu.memory_space<vmem>>, vector<1x4x256xf32>,
    %c0_30 = arith.constant 0 : index
    %c4_31 = arith.constant 4 : index
    %c0_32 = arith.constant 0 : index
    %61 = vector.load %arg9[%c0_30, %c4_31, %c0_32] : memref<1x8x256xf32, #tpu.memory_space<vmem>>, vector<1x4x256xf32>
    %62 = vector.shape_cast %61 : vector<1x4x256xf32> to vector<4x256xf32>
    %63 = vector.shape_cast %57 : vector<4x256xf32> to vector<1x4x256xf32>
    tpu.vector_store %arg9[%c0_30, %c4_31, %c0_32], %63 {strides = array<i32>} : memref<1x8x256xf32, #tpu.memory_space<vmem>>, vector<1x4x256xf32>,
    return
  }
  func.func @transform_0(%arg0: i32) -> (i32, i32, i32) {
    %c0_i32 = arith.constant 0 : i32
    %c0_i32_0 = arith.constant 0 : i32
    %c0_i32_1 = arith.constant 0 : i32
    return %arg0, %c0_i32, %c0_i32_0 : i32, i32, i32
  }
  func.func @transform_1(%arg0: i32) -> (i32, i32) {
    %c0_i32 = arith.constant 0 : i32
    %c0_i32_0 = arith.constant 0 : i32
    %c0_i32_1 = arith.constant 0 : i32
    return %c0_i32, %c0_i32_0 : i32, i32
  }
  func.func @transform_2(%arg0: i32) -> (i32, i32) {
    %c0_i32 = arith.constant 0 : i32
    %c0_i32_0 = arith.constant 0 : i32
    %c0_i32_1 = arith.constant 0 : i32
    return %c0_i32, %c0_i32_0 : i32, i32
  }
  func.func @transform_3(%arg0: i32) -> (i32, i32) {
    %c0_i32 = arith.constant 0 : i32
    %c0_i32_0 = arith.constant 0 : i32
    %c0_i32_1 = arith.constant 0 : i32
    return %c0_i32, %c0_i32_0 : i32, i32
  }
  func.func @transform_4(%arg0: i32) -> (i32, i32) {
    %c0_i32 = arith.constant 0 : i32
    %c0_i32_0 = arith.constant 0 : i32
    %c0_i32_1 = arith.constant 0 : i32
    return %c0_i32, %c0_i32_0 : i32, i32
  }
  func.func @transform_5(%arg0: i32) -> (i32, i32) {
    %c0_i32 = arith.constant 0 : i32
    %c0_i32_0 = arith.constant 0 : i32
    %c0_i32_1 = arith.constant 0 : i32
    return %c0_i32, %c0_i32_0 : i32, i32
  }
  func.func @transform_6(%arg0: i32) -> (i32, i32) {
    %c0_i32 = arith.constant 0 : i32
    %c0_i32_0 = arith.constant 0 : i32
    %c0_i32_1 = arith.constant 0 : i32
    return %c0_i32, %c0_i32_0 : i32, i32
  }
  func.func @transform_7(%arg0: i32) -> (i32, i32) {
    %c0_i32 = arith.constant 0 : i32
    %c0_i32_0 = arith.constant 0 : i32
    %c0_i32_1 = arith.constant 0 : i32
    return %c0_i32, %c0_i32_0 : i32, i32
  }
  func.func @transform_8(%arg0: i32) -> (i32, i32, i32) {
    %c0_i32 = arith.constant 0 : i32
    %c0_i32_0 = arith.constant 0 : i32
    %c0_i32_1 = arith.constant 0 : i32
    return %arg0, %c0_i32, %c0_i32_0 : i32, i32, i32
  }
}

</mosaic_0001>

<llo_original>
// kernel: densenet_basic_block.2
$region0: #{densenet_basic_block.2}
  #allocation0 [shape = 'u32[]', space=smem, size = 0x4, offset = 0x4, fixed_abs, tag = 'smem constant byte address 0x4 - core index']
  #allocation1 [shape = 'u32[144,128]{1,0:T(1,128)}', space=vmem, size = 0x12000, scoped, tag = 'internal scratch']
  %s0 = inlined_call_operand.vmem [shape: f32[2,4,256], index: 0, kind: input, shape index: {}]
  %s1 = inlined_call_operand.vmem [shape: f32[4,1], index: 1, kind: input, shape index: {}]
  %s2 = inlined_call_operand.vmem [shape: f32[4,1], index: 2, kind: input, shape index: {}]
  %s3 = inlined_call_operand.vmem [shape: f32[16,4], index: 3, kind: input, shape index: {}]
  %s4 = inlined_call_operand.vmem [shape: f32[2,16,2], index: 4, kind: output, shape index: {}]
  %s5 = sld [smem:[#allocation0]]
  $region49: #{densenet_basic_block.2} parent=0
    _
  %s7 = ssub.s32 1, %s5
  %s8 = scalar_select 0, %s7, %s5
  loop: start=0, step=1, limit=4
  $region2: #{densenet_basic_block.2} parent=0 // loop_pre_header
    _
  $region3: #{densenet_basic_block.2} parent=0 // loop_header
    %s10 = sphi 0, %s14
    %p11 = scmp.ge.s32.totalorder %s10, 4
    %s20 = sphi 0, %s22
    %s23 = sphi 0, %s20
    %s24 = sphi 0, %s23
    %s40 = sphi 0, %s24
    %s44 = sphi 0, %s44
    %s46 = sphi 0, %s44
    %s47 = sphi 0, %s46
    %s61 = sphi 0, %s47
    %s65 = sphi 0, %s65
    %s67 = sphi 0, %s65
    %s68 = sphi 0, %s67
    %s82 = sphi 0, %s68
    %s86 = sphi 0, %s86
    %s88 = sphi 0, %s86
    %s89 = sphi 0, %s88
    %s103 = sphi 0, %s89
    %s109 = sphi 0, %s111
    %s112 = sphi 0, %s109
    %s113 = sphi 0, %s112
    %s129 = sphi 0, %s113
  $region4: #{densenet_basic_block.2} parent=0 // loop_header_branch
    %13 = sbr.rel (%p11) target = $region8
  $region5: #{densenet_basic_block.2} parent=0 // loop_body
    %s15 = ssub.s32 %s10, 1
    %s16 = ssub.s32 %s10, 2
    %s17 = sadd.s32 %s10, 1
    %s18 = ssub.s32 %s10, %s17
    %p19 = scmp.eq.s32.totalorder %s18, 0
    %s21 = sadd.s32 %s20, 1
    %s22 = scalar_select %p19, %s20, %s21
    %p25 = pneg %p19
    %p26 = scmp.eq.s32.totalorder %s10, 1
    %p27 = por %p25, %p26
    %p28 = scmp.ne.s32.totalorder %s20, %s23
    %p29 = scmp.eq.s32.totalorder %s10, 0
    %p30 = por %p28, %p29
    %p31 = scmp.ne.s32.totalorder %s20, %s23
    %p32 = scmp.eq.s32.totalorder %s15, 1
    %p33 = por %p31, %p32
    %p34 = scmp.ne.s32.totalorder %s23, %s24
    %p35 = scmp.eq.s32.totalorder %s15, 0
    %p36 = por %p34, %p35
    %p37 = scmp.ne.s32.totalorder %s23, %s24
    %p38 = scmp.eq.s32.totalorder %s16, 1
    %p39 = por %p37, %p38
    %p41 = scmp.ne.s32.totalorder %s24, %s40
    %p42 = scmp.eq.s32.totalorder %s16, 0
    %p43 = por %p41, %p42
    %s45 = sadd.s32 %s44, 1
    %p48 = scmp.eq.s32.totalorder %s10, 1
    %p49 = scmp.ne.s32.totalorder %s44, %s46
    %p50 = scmp.eq.s32.totalorder %s10, 0
    %p51 = por %p49, %p50
    %p52 = scmp.ne.s32.totalorder %s44, %s46
    %p53 = scmp.eq.s32.totalorder %s15, 1
    %p54 = por %p52, %p53
    %p55 = scmp.ne.s32.totalorder %s46, %s47
    %p56 = scmp.eq.s32.totalorder %s15, 0
    %p57 = por %p55, %p56
    %p58 = scmp.ne.s32.totalorder %s46, %s47
    %p59 = scmp.eq.s32.totalorder %s16, 1
    %p60 = por %p58, %p59
    %p62 = scmp.ne.s32.totalorder %s47, %s61
    %p63 = scmp.eq.s32.totalorder %s16, 0
    %p64 = por %p62, %p63
    %s66 = sadd.s32 %s65, 1
    %p69 = scmp.eq.s32.totalorder %s10, 1
    %p70 = scmp.ne.s32.totalorder %s65, %s67
    %p71 = scmp.eq.s32.totalorder %s10, 0
    %p72 = por %p70, %p71
    %p73 = scmp.ne.s32.totalorder %s65, %s67
    %p74 = scmp.eq.s32.totalorder %s15, 1
    %p75 = por %p73, %p74
    %p76 = scmp.ne.s32.totalorder %s67, %s68
    %p77 = scmp.eq.s32.totalorder %s15, 0
    %p78 = por %p76, %p77
    %p79 = scmp.ne.s32.totalorder %s67, %s68
    %p80 = scmp.eq.s32.totalorder %s16, 1
    %p81 = por %p79, %p80
    %p83 = scmp.ne.s32.totalorder %s68, %s82
    %p84 = scmp.eq.s32.totalorder %s16, 0
    %p85 = por %p83, %p84
    %s87 = sadd.s32 %s86, 1
    %p90 = scmp.eq.s32.totalorder %s10, 1
    %p91 = scmp.ne.s32.totalorder %s86, %s88
    %p92 = scmp.eq.s32.totalorder %s10, 0
    %p93 = por %p91, %p92
    %p94 = scmp.ne.s32.totalorder %s86, %s88
    %p95 = scmp.eq.s32.totalorder %s15, 1
    %p96 = por %p94, %p95
    %p97 = scmp.ne.s32.totalorder %s88, %s89
    %p98 = scmp.eq.s32.totalorder %s15, 0
    %p99 = por %p97, %p98
    %p100 = scmp.ne.s32.totalorder %s88, %s89
    %p101 = scmp.eq.s32.totalorder %s16, 1
    %p102 = por %p100, %p101
    %p104 = scmp.ne.s32.totalorder %s89, %s103
    %p105 = scmp.eq.s32.totalorder %s16, 0
    %p106 = por %p104, %p105
    %s107 = ssub.s32 %s10, %s17
    %p108 = scmp.eq.s32.totalorder %s107, 0
    %s110 = sadd.s32 %s109, 1
    %s111 = scalar_select %p108, %s109, %s110
    %p114 = pneg %p108
    %p115 = scmp.eq.s32.totalorder %s10, 1
    %p116 = por %p114, %p115
    %p117 = scmp.ne.s32.totalorder %s109, %s112
    %p118 = scmp.eq.s32.totalorder %s10, 0
    %p119 = por %p117, %p118
    %p120 = scmp.ne.s32.totalorder %s109, %s112
    %p121 = scmp.eq.s32.totalorder %s15, 1
    %p122 = por %p120, %p121
    %p123 = scmp.ne.s32.totalorder %s112, %s113
    %p124 = scmp.eq.s32.totalorder %s15, 0
    %p125 = por %p123, %p124
    %p126 = scmp.ne.s32.totalorder %s112, %s113
    %p127 = scmp.eq.s32.totalorder %s16, 1
    %p128 = por %p126, %p127
    %p130 = scmp.ne.s32.totalorder %s113, %s129
    %p131 = scmp.eq.s32.totalorder %s16, 0
    %p132 = por %p130, %p131
    %p133 = scmp.le.s32.totalorder 1, %s10
    %p134 = scmp.lt.s32.totalorder %s10, 3
    %p135 = pnand %p133, %p134
    %p136 = pneg %p135
    // Predicated region
    $region9: #{densenet_basic_block.2} parent=5 // pred_check
      _
    $region10: #{densenet_basic_block.2} parent=5 // pred_check_branch
      %138 = sbr.rel (%p135) target = $region12
    $region11: #{densenet_basic_block.2} parent=5 // pred_region
      %s139 = ssub.s32 %s10, 1
      // Predicated region
      $region13: #{densenet_basic_block.2} parent=11 // pred_check
        %p140 = pneg %p57
      $region14: #{densenet_basic_block.2} parent=11 // pred_check_branch
        %142 = sbr.rel (%p140) target = $region16
      $region15: #{densenet_basic_block.2} parent=11 // pred_region
        _
      $region16: #{densenet_basic_block.2} parent=11 // pred_fallthru
        _
      // Predicated region
      $region17: #{densenet_basic_block.2} parent=11 // pred_check
        %p143 = pneg %p78
      $region18: #{densenet_basic_block.2} parent=11 // pred_check_branch
        %145 = sbr.rel (%p143) target = $region20
      $region19: #{densenet_basic_block.2} parent=11 // pred_region
        _
      $region20: #{densenet_basic_block.2} parent=11 // pred_fallthru
        _
      // Predicated region
      $region21: #{densenet_basic_block.2} parent=11 // pred_check
        %p146 = pneg %p99
      $region22: #{densenet_basic_block.2} parent=11 // pred_check_branch
        %148 = sbr.rel (%p146) target = $region24
      $region23: #{densenet_basic_block.2} parent=11 // pred_region
        _
      $region24: #{densenet_basic_block.2} parent=11 // pred_fallthru
        _
    $region12: #{densenet_basic_block.2} parent=5 // pred_fallthru
      _
    %p149 = scmp.lt.s32.totalorder %s10, 2
    // Predicated region
    $region25: #{densenet_basic_block.2} parent=5 // pred_check
      %p150 = pneg %p149
    $region26: #{densenet_basic_block.2} parent=5 // pred_check_branch
      %152 = sbr.rel (%p150) target = $region28
    $region27: #{densenet_basic_block.2} parent=5 // pred_region
      // Predicated region
      $region29: #{densenet_basic_block.2} parent=27 // pred_check
        %p153 = pneg %p30
      $region30: #{densenet_basic_block.2} parent=27 // pred_check_branch
        %155 = sbr.rel (%p153) target = $region32
      $region31: #{densenet_basic_block.2} parent=27 // pred_region
        %p156 = scmp.lt.s32.totalorder %s10, 1
        %s157 = scalar_select %p156, %s10, 1
        %s158 = smul.addr %s157, 2
        %s159 = smul.addr %s158, 4
        %s160 = scalar_lea.vmem %s0, %s159
      $region32: #{densenet_basic_block.2} parent=27 // pred_fallthru
        _
    $region28: #{densenet_basic_block.2} parent=5 // pred_fallthru
      _
    %p161 = scmp.le.s32.totalorder 1, %s10
    %p162 = scmp.lt.s32.totalorder %s10, 3
    %p163 = pnand %p161, %p162
    %p164 = pneg %p163
    // Predicated region
    $region33: #{densenet_basic_block.2} parent=5 // pred_check
      _
    $region34: #{densenet_basic_block.2} parent=5 // pred_check_branch
      %166 = sbr.rel (%p163) target = $region36
    $region35: #{densenet_basic_block.2} parent=5 // pred_region
      %s167 = ssub.s32 %s10, 1
      %p168 = scmp.lt.s32.totalorder %s15, 1
      %s169 = scalar_select %p168, %s15, 1
      %s170 = smul.addr %s169, 2
      %s171 = smul.addr %s170, 4
      %s172 = scalar_lea.vmem %s0, %s171
      %p173 = pneg %p36
      %p174 = pneg %p33
      %p175 = pneg %p57
      %p176 = pneg %p54
      %p177 = pneg %p78
      %p178 = pneg %p75
      %p179 = pneg %p99
      %p180 = pneg %p96
      %p181 = pneg %p125
      %p182 = pneg %p122
      %p183 = scmp.lt.s32.totalorder %s15, 1
      %s184 = scalar_select %p183, %s15, 1
      %s185 = smul.addr %s184, 2
      %s186 = smul.addr %s185, 8
      %s187 = scalar_lea.vmem %s4, %s186
      %p188 = scmp.lt.s32.totalorder %s15, 1
      %s189 = scalar_select %p188, %s15, 1
      %s190 = smul.addr %s189, 2
      %s191 = smul.addr %s190, 4
      %s192 = scalar_lea.vmem %s0, %s191
      %p193 = scmp.lt.s32.totalorder %s15, 1
      %s194 = scalar_select %p193, %s15, 1
      %s195 = smul.addr %s194, 2
      %s196 = smul.addr %s195, 8
      %s197 = scalar_lea.vmem %s4, %s196
      %v198 = vld [vmem:[%s3] sm:$0xff]
      %v199 = vld [vmem:[%s3 + $0x8] sm:$0xff]
      %v200 = vld [vmem:[%s1] sm:$0xf]
      %v201 = vld [vmem:[%s2] sm:$0xf]
      %v202 = vld [vmem:[%s192] sm:$0xff]
      %204 = vset.pattern.permute.xlu0 0
      %205 = vperm.xlu0 %204, %v200
      %v206 = vpop.permute.xlu0 %205
      %v208 = vunpack.c.l.s4 839922192
      %v209 = vunpack.c.0.s8 %v208
      %v210 = vlaneseq
      %v211 = vshrl.u32 %v210, 7
      %v212 = vsub.s32 %v209, %v211
      %v213 = vrot.slane %v206, %v212
      %v215 = vmul.f32 %v202, %v213
      %217 = vset.pattern.permute.xlu0 0
      %218 = vperm.xlu0 %217, %v201
      %v219 = vpop.permute.xlu0 %218
      %v221 = vunpack.c.l.s4 839922192
      %v222 = vunpack.c.0.s8 %v221
      %v223 = vlaneseq
      %v224 = vshrl.u32 %v223, 7
      %v225 = vsub.s32 %v222, %v224
      %v226 = vrot.slane %v219, %v225
      %v228 = vadd.f32 %v215, %v226
      %v229 = vmax.f32 %v228, 0.0
      %v231 = vcombine.high %v229, %v229
      %vm232 = vcmask 31744
      %v234 = vsel %vm232, %v198, 0
      %v237 = vsel %vm232, %v199, 0
      %vm239 = vcmask 1043456
      %v240 = vsel %vm239, %v229, 0
      %v242 = vsel %vm239, %v231, 0
      %244 = vmatprep.subr.mxu0 0.0
      %245 = vmatpush1.msra.mxu0 0.0
      %246 = vmatprep.subr.mxu0 0.0
      %247 = vmatpush1.msra.mxu0 0.0
      %248 = vmatprep.subr.mxu0 0.0
      %249 = vmatpush1.msra.mxu0 0.0
      %250 = vmatprep.subr.mxu0 0.0
      %251 = vmatpush1.msra.mxu0 0.0
      %252 = vmatprep.subr.mxu0 0.0
      %253 = vmatpush1.msra.mxu0 0.0
      %254 = vmatprep.subr.mxu0 0.0
      %255 = vmatpush1.msra.mxu0 0.0
      %256 = vmatprep.subr.mxu0 0.0
      %257 = vmatpush1.msra.mxu0 0.0
      %258 = vmatprep.subr.mxu0 0.0
      %259 = vmatpush1.msra.mxu0 0.0
      %260 = vmatprep.subr.mxu0 0.0
      %261 = vmatpush1.msra.mxu0 0.0
      %262 = vmatprep.subr.mxu0 0.0
      %263 = vmatpush1.msra.mxu0 0.0
      %264 = vmatprep.subr.mxu0 0.0
      %265 = vmatpush1.msra.mxu0 0.0
      %266 = vmatprep.subr.mxu0 0.0
      %267 = vmatpush1.msra.mxu0 0.0
      %268 = vmatprep.subr.mxu0 0.0
      %269 = vmatpush1.msra.mxu0 0.0
      %270 = vmatprep.subr.mxu0 0.0
      %271 = vmatpush1.msra.mxu0 0.0
      %272 = vmatprep.subr.mxu0 0.0
      %273 = vmatpush1.msra.mxu0 0.0
      %274 = vmatprep.subr.mxu0 %v242
      %275 = vmatpush1.msra.mxu0 %v240
      %276 = vmatprep.subr.mxu0 0.0
      %277 = vmatpush2.msra.mxu0 0.0
      %278 = vmatprep.subr.mxu0 0.0
      %279 = vmatpush2.msra.mxu0 0.0
      %280 = vmatprep.subr.mxu0 0.0
      %281 = vmatpush2.msra.mxu0 0.0
      %282 = vmatprep.subr.mxu0 0.0
      %283 = vmatpush2.msra.mxu0 0.0
      %284 = vmatprep.subr.mxu0 0.0
      %285 = vmatpush2.msra.mxu0 0.0
      %286 = vmatprep.subr.mxu0 0.0
      %287 = vmatpush2.msra.mxu0 0.0
      %288 = vmatprep.subr.mxu0 0.0
      %289 = vmatpush2.msra.mxu0 0.0
      %290 = vmatprep.subr.mxu0 0.0
      %291 = vmatpush2.msra.mxu0 0.0
      %292 = vmatprep.subr.mxu0 0.0
      %293 = vmatpush2.msra.mxu0 0.0
      %294 = vmatprep.subr.mxu0 0.0
      %295 = vmatpush2.msra.mxu0 0.0
      %296 = vmatprep.subr.mxu0 0.0
      %297 = vmatpush2.msra.mxu0 0.0
      %298 = vmatprep.subr.mxu0 0.0
      %299 = vmatpush2.msra.mxu0 0.0
      %300 = vmatprep.subr.mxu0 0.0
      %301 = vmatpush2.msra.mxu0 0.0
      %302 = vmatprep.subr.mxu0 0.0
      %303 = vmatpush2.msra.mxu0 0.0
      %304 = vmatprep.subr.mxu0 0.0
      %305 = vmatpush2.msra.mxu0 0.0
      %306 = vmatprep.subr.mxu0 0.0
      %307 = vmatpush2.msra.mxu0 0.0
      %308 = vmatprep.mubr.f32.mxu0 0.0
      %309 = vmatmul.mubr.f32.gmra.mxu0 %v234
      %v310 = vpop.f32.mrf.mxu0
      %v311 = vadd.f32 0.0, %v310
      %v312 = vpop.f32.mrf.mxu0
      %v313 = vadd.f32 0.0, %v312
      %314 = vmatprep.mubr.f32.mxu0 0.0
      %315 = vmatmul.mubr.f32.gmra.mxu0 %v237
      %v316 = vpop.f32.mrf.mxu0
      %v317 = vadd.f32 0.0, %v316
      %v318 = vpop.f32.mrf.mxu0
      %v319 = vadd.f32 0.0, %v318
      %320 = vdwg.mxu0
      %v321 = vadd.f32 %v311, %v313
      %322 = vadd.xlane.f32.xlu0 %v321
      %v323 = vpop.xlane.xlu0 %322
      %v324 = vadd.f32 %v317, %v319
      %325 = vadd.xlane.f32.xlu0 %v324
      %v326 = vpop.xlane.xlu0 %325
      %v327 = vadd.f32 %v323, 0.0
      %v328 = vadd.f32 %v326, 0.0
      %v329 = vmul.f32 %v327, 0.00390625
      %v330 = vmul.f32 %v328, 0.00390625
      %v331 = vsub.f32 %v311, %v329
      %v332 = vsub.f32 %v313, %v329
      %v333 = vsub.f32 %v317, %v330
      %v334 = vsub.f32 %v319, %v330
      %v335 = vmul.f32 %v331, %v331
      %v336 = vmul.f32 %v332, %v332
      %v337 = vmul.f32 %v333, %v333
      %v338 = vmul.f32 %v334, %v334
      %v339 = vadd.f32 %v335, %v336
      %340 = vadd.xlane.f32.xlu0 %v339
      %v341 = vpop.xlane.xlu0 %340
      %v342 = vadd.f32 %v337, %v338
      %343 = vadd.xlane.f32.xlu0 %v342
      %v344 = vpop.xlane.xlu0 %343
      %v345 = vadd.f32 %v341, 0.0
      %v346 = vadd.f32 %v344, 0.0
      %vm347 = vcmask 7168
      %348 = vst.msk [vmem:[%s197] sm:$0xff] %vm347, %v327
      %349 = vst.msk [vmem:[%s197 + $0x8] sm:$0xff] %vm347, %v328
      %vm350 = vcmask 15368
      %351 = vst.msk [vmem:[%s197] sm:$0xff] %vm350, %v345
      %352 = vst.msk [vmem:[%s197 + $0x8] sm:$0xff] %vm350, %v346
      %p353 = scmp.lt.s32.totalorder %s15, 1
      %s354 = scalar_select %p353, %s15, 1
      %s355 = smul.addr %s354, 2
      %s356 = smul.addr %s355, 8
      %s357 = scalar_lea.vmem %s4, %s356
      // Predicated region
      $region37: #{densenet_basic_block.2} parent=35 // pred_check
        %p358 = pneg %p122
      $region38: #{densenet_basic_block.2} parent=35 // pred_check_branch
        %360 = sbr.rel (%p358) target = $region40
      $region39: #{densenet_basic_block.2} parent=35 // pred_region
        _
      $region40: #{densenet_basic_block.2} parent=35 // pred_fallthru
        _
    $region36: #{densenet_basic_block.2} parent=5 // pred_fallthru
      _
    %p361 = scmp.le.s32.totalorder 2, %s10
    // Predicated region
    $region41: #{densenet_basic_block.2} parent=5 // pred_check
      %p362 = pneg %p361
    $region42: #{densenet_basic_block.2} parent=5 // pred_check_branch
      %364 = sbr.rel (%p362) target = $region44
    $region43: #{densenet_basic_block.2} parent=5 // pred_region
      %s365 = ssub.s32 %s10, 2
      // Predicated region
      $region45: #{densenet_basic_block.2} parent=43 // pred_check
        %p366 = pneg %p128
      $region46: #{densenet_basic_block.2} parent=43 // pred_check_branch
        %368 = sbr.rel (%p366) target = $region48
      $region47: #{densenet_basic_block.2} parent=43 // pred_region
        %p369 = scmp.lt.s32.totalorder %s16, 1
        %s370 = scalar_select %p369, %s16, 1
        %s371 = smul.addr %s370, 2
        %s372 = smul.addr %s371, 8
        %s373 = scalar_lea.vmem %s4, %s372
      $region48: #{densenet_basic_block.2} parent=43 // pred_fallthru
        _
    $region44: #{densenet_basic_block.2} parent=5 // pred_fallthru
      _
  $region6: #{densenet_basic_block.2} parent=0 // loop_footer
    %s14 = sadd.s32 1, %s10
  $region7: #{densenet_basic_block.2} parent=0 // loop_footer_branch
    %9 = sbr.rel target = $region3
  $region8: #{densenet_basic_block.2} parent=0 // loop_exit
    _

// kernel: densenet_basic_block.3
$region0: #{densenet_basic_block.3}
  #allocation0 [shape = 'u32[]', space=smem, size = 0x4, offset = 0x4, fixed_abs, tag = 'smem constant byte address 0x4 - core index']
  #allocation1 [shape = 'u32[144,128]{1,0:T(1,128)}', space=vmem, size = 0x12000, scoped, tag = 'internal scratch']
  %s0 = inlined_call_operand.vmem [shape: f32[2,4,256], index: 0, kind: input, shape index: {}]
  %s1 = inlined_call_operand.vmem [shape: f32[4,1], index: 1, kind: input, shape index: {}]
  %s2 = inlined_call_operand.vmem [shape: f32[4,1], index: 2, kind: input, shape index: {}]
  %s3 = inlined_call_operand.vmem [shape: f32[16,4], index: 3, kind: input, shape index: {}]
  %s4 = inlined_call_operand.vmem [shape: f32[16,1], index: 4, kind: input, shape index: {}]
  %s5 = inlined_call_operand.vmem [shape: f32[16,1], index: 5, kind: input, shape index: {}]
  %s6 = inlined_call_operand.vmem [shape: f32[4,144], index: 6, kind: input, shape index: {}]
  %s7 = inlined_call_operand.vmem [shape: f32[9,256], index: 7, kind: input, shape index: {}]
  %s8 = inlined_call_operand.vmem [shape: f32[2,8,256], index: 8, kind: output, shape index: {}]
  %s9 = sld [smem:[#allocation0]]
  $region65: #{densenet_basic_block.3} parent=0
    _
  %s11 = ssub.s32 1, %s9
  %s12 = scalar_select 0, %s11, %s9
  loop: start=0, step=1, limit=4
  $region2: #{densenet_basic_block.3} parent=0 // loop_pre_header
    _
  $region3: #{densenet_basic_block.3} parent=0 // loop_header
    %s14 = sphi 0, %s18
    %p15 = scmp.ge.s32.totalorder %s14, 4
    %s24 = sphi 0, %s26
    %s27 = sphi 0, %s24
    %s28 = sphi 0, %s27
    %s44 = sphi 0, %s28
    %s48 = sphi 0, %s48
    %s50 = sphi 0, %s48
    %s51 = sphi 0, %s50
    %s65 = sphi 0, %s51
    %s69 = sphi 0, %s69
    %s71 = sphi 0, %s69
    %s72 = sphi 0, %s71
    %s86 = sphi 0, %s72
    %s90 = sphi 0, %s90
    %s92 = sphi 0, %s90
    %s93 = sphi 0, %s92
    %s107 = sphi 0, %s93
    %s111 = sphi 0, %s111
    %s113 = sphi 0, %s111
    %s114 = sphi 0, %s113
    %s128 = sphi 0, %s114
    %s132 = sphi 0, %s132
    %s134 = sphi 0, %s132
    %s135 = sphi 0, %s134
    %s149 = sphi 0, %s135
    %s153 = sphi 0, %s153
    %s155 = sphi 0, %s153
    %s156 = sphi 0, %s155
    %s170 = sphi 0, %s156
    %s174 = sphi 0, %s174
    %s176 = sphi 0, %s174
    %s177 = sphi 0, %s176
    %s191 = sphi 0, %s177
    %s197 = sphi 0, %s199
    %s200 = sphi 0, %s197
    %s201 = sphi 0, %s200
    %s217 = sphi 0, %s201
  $region4: #{densenet_basic_block.3} parent=0 // loop_header_branch
    %17 = sbr.rel (%p15) target = $region8
  $region5: #{densenet_basic_block.3} parent=0 // loop_body
    %s19 = ssub.s32 %s14, 1
    %s20 = ssub.s32 %s14, 2
    %s21 = sadd.s32 %s14, 1
    %s22 = ssub.s32 %s14, %s21
    %p23 = scmp.eq.s32.totalorder %s22, 0
    %s25 = sadd.s32 %s24, 1
    %s26 = scalar_select %p23, %s24, %s25
    %p29 = pneg %p23
    %p30 = scmp.eq.s32.totalorder %s14, 1
    %p31 = por %p29, %p30
    %p32 = scmp.ne.s32.totalorder %s24, %s27
    %p33 = scmp.eq.s32.totalorder %s14, 0
    %p34 = por %p32, %p33
    %p35 = scmp.ne.s32.totalorder %s24, %s27
    %p36 = scmp.eq.s32.totalorder %s19, 1
    %p37 = por %p35, %p36
    %p38 = scmp.ne.s32.totalorder %s27, %s28
    %p39 = scmp.eq.s32.totalorder %s19, 0
    %p40 = por %p38, %p39
    %p41 = scmp.ne.s32.totalorder %s27, %s28
    %p42 = scmp.eq.s32.totalorder %s20, 1
    %p43 = por %p41, %p42
    %p45 = scmp.ne.s32.totalorder %s28, %s44
    %p46 = scmp.eq.s32.totalorder %s20, 0
    %p47 = por %p45, %p46
    %s49 = sadd.s32 %s48, 1
    %p52 = scmp.eq.s32.totalorder %s14, 1
    %p53 = scmp.ne.s32.totalorder %s48, %s50
    %p54 = scmp.eq.s32.totalorder %s14, 0
    %p55 = por %p53, %p54
    %p56 = scmp.ne.s32.totalorder %s48, %s50
    %p57 = scmp.eq.s32.totalorder %s19, 1
    %p58 = por %p56, %p57
    %p59 = scmp.ne.s32.totalorder %s50, %s51
    %p60 = scmp.eq.s32.totalorder %s19, 0
    %p61 = por %p59, %p60
    %p62 = scmp.ne.s32.totalorder %s50, %s51
    %p63 = scmp.eq.s32.totalorder %s20, 1
    %p64 = por %p62, %p63
    %p66 = scmp.ne.s32.totalorder %s51, %s65
    %p67 = scmp.eq.s32.totalorder %s20, 0
    %p68 = por %p66, %p67
    %s70 = sadd.s32 %s69, 1
    %p73 = scmp.eq.s32.totalorder %s14, 1
    %p74 = scmp.ne.s32.totalorder %s69, %s71
    %p75 = scmp.eq.s32.totalorder %s14, 0
    %p76 = por %p74, %p75
    %p77 = scmp.ne.s32.totalorder %s69, %s71
    %p78 = scmp.eq.s32.totalorder %s19, 1
    %p79 = por %p77, %p78
    %p80 = scmp.ne.s32.totalorder %s71, %s72
    %p81 = scmp.eq.s32.totalorder %s19, 0
    %p82 = por %p80, %p81
    %p83 = scmp.ne.s32.totalorder %s71, %s72
    %p84 = scmp.eq.s32.totalorder %s20, 1
    %p85 = por %p83, %p84
    %p87 = scmp.ne.s32.totalorder %s72, %s86
    %p88 = scmp.eq.s32.totalorder %s20, 0
    %p89 = por %p87, %p88
    %s91 = sadd.s32 %s90, 1
    %p94 = scmp.eq.s32.totalorder %s14, 1
    %p95 = scmp.ne.s32.totalorder %s90, %s92
    %p96 = scmp.eq.s32.totalorder %s14, 0
    %p97 = por %p95, %p96
    %p98 = scmp.ne.s32.totalorder %s90, %s92
    %p99 = scmp.eq.s32.totalorder %s19, 1
    %p100 = por %p98, %p99
    %p101 = scmp.ne.s32.totalorder %s92, %s93
    %p102 = scmp.eq.s32.totalorder %s19, 0
    %p103 = por %p101, %p102
    %p104 = scmp.ne.s32.totalorder %s92, %s93
    %p105 = scmp.eq.s32.totalorder %s20, 1
    %p106 = por %p104, %p105
    %p108 = scmp.ne.s32.totalorder %s93, %s107
    %p109 = scmp.eq.s32.totalorder %s20, 0
    %p110 = por %p108, %p109
    %s112 = sadd.s32 %s111, 1
    %p115 = scmp.eq.s32.totalorder %s14, 1
    %p116 = scmp.ne.s32.totalorder %s111, %s113
    %p117 = scmp.eq.s32.totalorder %s14, 0
    %p118 = por %p116, %p117
    %p119 = scmp.ne.s32.totalorder %s111, %s113
    %p120 = scmp.eq.s32.totalorder %s19, 1
    %p121 = por %p119, %p120
    %p122 = scmp.ne.s32.totalorder %s113, %s114
    %p123 = scmp.eq.s32.totalorder %s19, 0
    %p124 = por %p122, %p123
    %p125 = scmp.ne.s32.totalorder %s113, %s114
    %p126 = scmp.eq.s32.totalorder %s20, 1
    %p127 = por %p125, %p126
    %p129 = scmp.ne.s32.totalorder %s114, %s128
    %p130 = scmp.eq.s32.totalorder %s20, 0
    %p131 = por %p129, %p130
    %s133 = sadd.s32 %s132, 1
    %p136 = scmp.eq.s32.totalorder %s14, 1
    %p137 = scmp.ne.s32.totalorder %s132, %s134
    %p138 = scmp.eq.s32.totalorder %s14, 0
    %p139 = por %p137, %p138
    %p140 = scmp.ne.s32.totalorder %s132, %s134
    %p141 = scmp.eq.s32.totalorder %s19, 1
    %p142 = por %p140, %p141
    %p143 = scmp.ne.s32.totalorder %s134, %s135
    %p144 = scmp.eq.s32.totalorder %s19, 0
    %p145 = por %p143, %p144
    %p146 = scmp.ne.s32.totalorder %s134, %s135
    %p147 = scmp.eq.s32.totalorder %s20, 1
    %p148 = por %p146, %p147
    %p150 = scmp.ne.s32.totalorder %s135, %s149
    %p151 = scmp.eq.s32.totalorder %s20, 0
    %p152 = por %p150, %p151
    %s154 = sadd.s32 %s153, 1
    %p157 = scmp.eq.s32.totalorder %s14, 1
    %p158 = scmp.ne.s32.totalorder %s153, %s155
    %p159 = scmp.eq.s32.totalorder %s14, 0
    %p160 = por %p158, %p159
    %p161 = scmp.ne.s32.totalorder %s153, %s155
    %p162 = scmp.eq.s32.totalorder %s19, 1
    %p163 = por %p161, %p162
    %p164 = scmp.ne.s32.totalorder %s155, %s156
    %p165 = scmp.eq.s32.totalorder %s19, 0
    %p166 = por %p164, %p165
    %p167 = scmp.ne.s32.totalorder %s155, %s156
    %p168 = scmp.eq.s32.totalorder %s20, 1
    %p169 = por %p167, %p168
    %p171 = scmp.ne.s32.totalorder %s156, %s170
    %p172 = scmp.eq.s32.totalorder %s20, 0
    %p173 = por %p171, %p172
    %s175 = sadd.s32 %s174, 1
    %p178 = scmp.eq.s32.totalorder %s14, 1
    %p179 = scmp.ne.s32.totalorder %s174, %s176
    %p180 = scmp.eq.s32.totalorder %s14, 0
    %p181 = por %p179, %p180
    %p182 = scmp.ne.s32.totalorder %s174, %s176
    %p183 = scmp.eq.s32.totalorder %s19, 1
    %p184 = por %p182, %p183
    %p185 = scmp.ne.s32.totalorder %s176, %s177
    %p186 = scmp.eq.s32.totalorder %s19, 0
    %p187 = por %p185, %p186
    %p188 = scmp.ne.s32.totalorder %s176, %s177
    %p189 = scmp.eq.s32.totalorder %s20, 1
    %p190 = por %p188, %p189
    %p192 = scmp.ne.s32.totalorder %s177, %s191
    %p193 = scmp.eq.s32.totalorder %s20, 0
    %p194 = por %p192, %p193
    %s195 = ssub.s32 %s14, %s21
    %p196 = scmp.eq.s32.totalorder %s195, 0
    %s198 = sadd.s32 %s197, 1
    %s199 = scalar_select %p196, %s197, %s198
    %p202 = pneg %p196
    %p203 = scmp.eq.s32.totalorder %s14, 1
    %p204 = por %p202, %p203
    %p205 = scmp.ne.s32.totalorder %s197, %s200
    %p206 = scmp.eq.s32.totalorder %s14, 0
    %p207 = por %p205, %p206
    %p208 = scmp.ne.s32.totalorder %s197, %s200
    %p209 = scmp.eq.s32.totalorder %s19, 1
    %p210 = por %p208, %p209
    %p211 = scmp.ne.s32.totalorder %s200, %s201
    %p212 = scmp.eq.s32.totalorder %s19, 0
    %p213 = por %p211, %p212
    %p214 = scmp.ne.s32.totalorder %s200, %s201
    %p215 = scmp.eq.s32.totalorder %s20, 1
    %p216 = por %p214, %p215
    %p218 = scmp.ne.s32.totalorder %s201, %s217
    %p219 = scmp.eq.s32.totalorder %s20, 0
    %p220 = por %p218, %p219
    %p221 = scmp.le.s32.totalorder 1, %s14
    %p222 = scmp.lt.s32.totalorder %s14, 3
    %p223 = pnand %p221, %p222
    %p224 = pneg %p223
    // Predicated region
    $region9: #{densenet_basic_block.3} parent=5 // pred_check
      _
    $region10: #{densenet_basic_block.3} parent=5 // pred_check_branch
      %226 = sbr.rel (%p223) target = $region12
    $region11: #{densenet_basic_block.3} parent=5 // pred_region
      %s227 = ssub.s32 %s14, 1
      // Predicated region
      $region13: #{densenet_basic_block.3} parent=11 // pred_check
        %p228 = pneg %p61
      $region14: #{densenet_basic_block.3} parent=11 // pred_check_branch
        %230 = sbr.rel (%p228) target = $region16
      $region15: #{densenet_basic_block.3} parent=11 // pred_region
        _
      $region16: #{densenet_basic_block.3} parent=11 // pred_fallthru
        _
      // Predicated region
      $region17: #{densenet_basic_block.3} parent=11 // pred_check
        %p231 = pneg %p82
      $region18: #{densenet_basic_block.3} parent=11 // pred_check_branch
        %233 = sbr.rel (%p231) target = $region20
      $region19: #{densenet_basic_block.3} parent=11 // pred_region
        _
      $region20: #{densenet_basic_block.3} parent=11 // pred_fallthru
        _
      // Predicated region
      $region21: #{densenet_basic_block.3} parent=11 // pred_check
        %p234 = pneg %p103
      $region22: #{densenet_basic_block.3} parent=11 // pred_check_branch
        %236 = sbr.rel (%p234) target = $region24
      $region23: #{densenet_basic_block.3} parent=11 // pred_region
        _
      $region24: #{densenet_basic_block.3} parent=11 // pred_fallthru
        _
      // Predicated region
      $region25: #{densenet_basic_block.3} parent=11 // pred_check
        %p237 = pneg %p124
      $region26: #{densenet_basic_block.3} parent=11 // pred_check_branch
        %239 = sbr.rel (%p237) target = $region28
      $region27: #{densenet_basic_block.3} parent=11 // pred_region
        _
      $region28: #{densenet_basic_block.3} parent=11 // pred_fallthru
        _
      // Predicated region
      $region29: #{densenet_basic_block.3} parent=11 // pred_check
        %p240 = pneg %p145
      $region30: #{densenet_basic_block.3} parent=11 // pred_check_branch
        %242 = sbr.rel (%p240) target = $region32
      $region31: #{densenet_basic_block.3} parent=11 // pred_region
        _
      $region32: #{densenet_basic_block.3} parent=11 // pred_fallthru
        _
      // Predicated region
      $region33: #{densenet_basic_block.3} parent=11 // pred_check
        %p243 = pneg %p166
      $region34: #{densenet_basic_block.3} parent=11 // pred_check_branch
        %245 = sbr.rel (%p243) target = $region36
      $region35: #{densenet_basic_block.3} parent=11 // pred_region
        _
      $region36: #{densenet_basic_block.3} parent=11 // pred_fallthru
        _
      // Predicated region
      $region37: #{densenet_basic_block.3} parent=11 // pred_check
        %p246 = pneg %p187
      $region38: #{densenet_basic_block.3} parent=11 // pred_check_branch
        %248 = sbr.rel (%p246) target = $region40
      $region39: #{densenet_basic_block.3} parent=11 // pred_region
        _
      $region40: #{densenet_basic_block.3} parent=11 // pred_fallthru
        _
    $region12: #{densenet_basic_block.3} parent=5 // pred_fallthru
      _
    %p249 = scmp.lt.s32.totalorder %s14, 2
    // Predicated region
    $region41: #{densenet_basic_block.3} parent=5 // pred_check
      %p250 = pneg %p249
    $region42: #{densenet_basic_block.3} parent=5 // pred_check_branch
      %252 = sbr.rel (%p250) target = $region44
    $region43: #{densenet_basic_block.3} parent=5 // pred_region
      // Predicated region
      $region45: #{densenet_basic_block.3} parent=43 // pred_check
        %p253 = pneg %p34
      $region46: #{densenet_basic_block.3} parent=43 // pred_check_branch
        %255 = sbr.rel (%p253) target = $region48
      $region47: #{densenet_basic_block.3} parent=43 // pred_region
        %p256 = scmp.lt.s32.totalorder %s14, 1
        %s257 = scalar_select %p256, %s14, 1
        %s258 = smul.addr %s257, 2
        %s259 = smul.addr %s258, 4
        %s260 = scalar_lea.vmem %s0, %s259
      $region48: #{densenet_basic_block.3} parent=43 // pred_fallthru
        _
    $region44: #{densenet_basic_block.3} parent=5 // pred_fallthru
      _
    %p261 = scmp.le.s32.totalorder 1, %s14
    %p262 = scmp.lt.s32.totalorder %s14, 3
    %p263 = pnand %p261, %p262
    %p264 = pneg %p263
    // Predicated region
    $region49: #{densenet_basic_block.3} parent=5 // pred_check
      _
    $region50: #{densenet_basic_block.3} parent=5 // pred_check_branch
      %266 = sbr.rel (%p263) target = $region52
    $region51: #{densenet_basic_block.3} parent=5 // pred_region
      %s267 = ssub.s32 %s14, 1
      %p268 = scmp.lt.s32.totalorder %s19, 1
      %s269 = scalar_select %p268, %s19, 1
      %s270 = smul.addr %s269, 2
      %s271 = smul.addr %s270, 4
      %s272 = scalar_lea.vmem %s0, %s271
      %p273 = pneg %p40
      %p274 = pneg %p37
      %p275 = pneg %p61
      %p276 = pneg %p58
      %p277 = pneg %p82
      %p278 = pneg %p79
      %p279 = pneg %p103
      %p280 = pneg %p100
      %p281 = pneg %p124
      %p282 = pneg %p121
      %p283 = pneg %p145
      %p284 = pneg %p142
      %p285 = pneg %p166
      %p286 = pneg %p163
      %p287 = pneg %p187
      %p288 = pneg %p184
      %p289 = pneg %p213
      %p290 = pneg %p210
      %p291 = scmp.lt.s32.totalorder %s19, 1
      %s292 = scalar_select %p291, %s19, 1
      %s293 = smul.addr %s292, 2
      %s294 = smul.addr %s293, 8
      %s295 = scalar_lea.vmem %s8, %s294
      %p296 = scmp.lt.s32.totalorder %s19, 1
      %s297 = scalar_select %p296, %s19, 1
      %s298 = smul.addr %s297, 2
      %s299 = smul.addr %s298, 4
      %s300 = scalar_lea.vmem %s0, %s299
      %p301 = scmp.lt.s32.totalorder %s19, 1
      %s302 = scalar_select %p301, %s19, 1
      %s303 = smul.addr %s302, 2
      %s304 = smul.addr %s303, 8
      %s305 = scalar_lea.vmem %s8, %s304
      %v306 = vld [vmem:[%s3] sm:$0xff]
      %v307 = vld [vmem:[%s3 + $0x8] sm:$0xff]
      %v308 = vld [vmem:[%s6] sm:$0xff]
      %v309 = vld [vmem:[%s1] sm:$0xf]
      %v310 = vld [vmem:[%s2] sm:$0xf]
      %v311 = vld [vmem:[%s4] sm:$0xff]
      %v312 = vld [vmem:[%s4 + $0x8] sm:$0xff]
      %v313 = vld [vmem:[%s5] sm:$0xff]
      %v314 = vld [vmem:[%s5 + $0x8] sm:$0xff]
      %v315 = vld [vmem:[%s7] ss:$8 sm:$0x3]
      %s316 = scalar_lea.vmem %s7, 1
      %v317 = vld [vmem:[%s316] ss:$8 sm:$0x3]
      %s318 = scalar_lea.vmem %s7, 2
      %v319 = vld [vmem:[%s318] ss:$8 sm:$0x3]
      %s320 = scalar_lea.vmem %s7, 3
      %v321 = vld [vmem:[%s320] ss:$8 sm:$0x3]
      %s322 = scalar_lea.vmem %s7, 4
      %v323 = vld [vmem:[%s322] ss:$8 sm:$0x3]
      %s324 = scalar_lea.vmem %s7, 5
      %v325 = vld [vmem:[%s324] ss:$8 sm:$0x3]
      %s326 = scalar_lea.vmem %s7, 6
      %v327 = vld [vmem:[%s326] ss:$8 sm:$0x3]
      %s328 = scalar_lea.vmem %s7, 7
      %v329 = vld [vmem:[%s328] ss:$8 sm:$0x3]
      %s330 = scalar_lea.vmem %s7, 16
      %v331 = vld [vmem:[%s330] ss:$8 sm:$0x3]
      %v332 = vld [vmem:[%s300] sm:$0xff]
      %334 = vset.pattern.permute.xlu0 0
      %335 = vperm.xlu0 %334, %v309
      %v336 = vpop.permute.xlu0 %335
      %v338 = vunpack.c.l.s4 839922192
      %v339 = vunpack.c.0.s8 %v338
      %v340 = vlaneseq
      %v341 = vshrl.u32 %v340, 7
      %v342 = vsub.s32 %v339, %v341
      %v343 = vrot.slane %v336, %v342
      %v345 = vmul.f32 %v332, %v343
      %347 = vset.pattern.permute.xlu0 0
      %348 = vperm.xlu0 %347, %v310
      %v349 = vpop.permute.xlu0 %348
      %v351 = vunpack.c.l.s4 839922192
      %v352 = vunpack.c.0.s8 %v351
      %v353 = vlaneseq
      %v354 = vshrl.u32 %v353, 7
      %v355 = vsub.s32 %v352, %v354
      %v356 = vrot.slane %v349, %v355
      %v358 = vadd.f32 %v345, %v356
      %v359 = vmax.f32 %v358, 0.0
      %v361 = vcombine.high %v359, %v359
      %vm362 = vcmask 31744
      %v364 = vsel %vm362, %v306, 0
      %v367 = vsel %vm362, %v307, 0
      %vm369 = vcmask 1043456
      %v370 = vsel %vm369, %v359, 0
      %v372 = vsel %vm369, %v361, 0
      %374 = vmatprep.subr.mxu0 0.0
      %375 = vmatpush1.msra.mxu0 0.0
      %376 = vmatprep.subr.mxu0 0.0
      %377 = vmatpush1.msra.mxu0 0.0
      %378 = vmatprep.subr.mxu0 0.0
      %379 = vmatpush1.msra.mxu0 0.0
      %380 = vmatprep.subr.mxu0 0.0
      %381 = vmatpush1.msra.mxu0 0.0
      %382 = vmatprep.subr.mxu0 0.0
      %383 = vmatpush1.msra.mxu0 0.0
      %384 = vmatprep.subr.mxu0 0.0
      %385 = vmatpush1.msra.mxu0 0.0
      %386 = vmatprep.subr.mxu0 0.0
      %387 = vmatpush1.msra.mxu0 0.0
      %388 = vmatprep.subr.mxu0 0.0
      %389 = vmatpush1.msra.mxu0 0.0
      %390 = vmatprep.subr.mxu0 0.0
      %391 = vmatpush1.msra.mxu0 0.0
      %392 = vmatprep.subr.mxu0 0.0
      %393 = vmatpush1.msra.mxu0 0.0
      %394 = vmatprep.subr.mxu0 0.0
      %395 = vmatpush1.msra.mxu0 0.0
      %396 = vmatprep.subr.mxu0 0.0
      %397 = vmatpush1.msra.mxu0 0.0
      %398 = vmatprep.subr.mxu0 0.0
      %399 = vmatpush1.msra.mxu0 0.0
      %400 = vmatprep.subr.mxu0 0.0
      %401 = vmatpush1.msra.mxu0 0.0
      %402 = vmatprep.subr.mxu0 0.0
      %403 = vmatpush1.msra.mxu0 0.0
      %404 = vmatprep.subr.mxu0 %v372
      %405 = vmatpush1.msra.mxu0 %v370
      %406 = vmatprep.subr.mxu0 0.0
      %407 = vmatpush2.msra.mxu0 0.0
      %408 = vmatprep.subr.mxu0 0.0
      %409 = vmatpush2.msra.mxu0 0.0
      %410 = vmatprep.subr.mxu0 0.0
      %411 = vmatpush2.msra.mxu0 0.0
      %412 = vmatprep.subr.mxu0 0.0
      %413 = vmatpush2.msra.mxu0 0.0
      %414 = vmatprep.subr.mxu0 0.0
      %415 = vmatpush2.msra.mxu0 0.0
      %416 = vmatprep.subr.mxu0 0.0
      %417 = vmatpush2.msra.mxu0 0.0
      %418 = vmatprep.subr.mxu0 0.0
      %419 = vmatpush2.msra.mxu0 0.0
      %420 = vmatprep.subr.mxu0 0.0
      %421 = vmatpush2.msra.mxu0 0.0
      %422 = vmatprep.subr.mxu0 0.0
      %423 = vmatpush2.msra.mxu0 0.0
      %424 = vmatprep.subr.mxu0 0.0
      %425 = vmatpush2.msra.mxu0 0.0
      %426 = vmatprep.subr.mxu0 0.0
      %427 = vmatpush2.msra.mxu0 0.0
      %428 = vmatprep.subr.mxu0 0.0
      %429 = vmatpush2.msra.mxu0 0.0
      %430 = vmatprep.subr.mxu0 0.0
      %431 = vmatpush2.msra.mxu0 0.0
      %432 = vmatprep.subr.mxu0 0.0
      %433 = vmatpush2.msra.mxu0 0.0
      %434 = vmatprep.subr.mxu0 0.0
      %435 = vmatpush2.msra.mxu0 0.0
      %436 = vmatprep.subr.mxu0 0.0
      %437 = vmatpush2.msra.mxu0 0.0
      %438 = vmatprep.mubr.f32.mxu0 0.0
      %439 = vmatmul.mubr.f32.gmra.mxu0 %v364
      %v440 = vpop.f32.mrf.mxu0
      %v441 = vadd.f32 0.0, %v440
      %v442 = vpop.f32.mrf.mxu0
      %v443 = vadd.f32 0.0, %v442
      %444 = vmatprep.mubr.f32.mxu0 0.0
      %445 = vmatmul.mubr.f32.gmra.mxu0 %v367
      %v446 = vpop.f32.mrf.mxu0
      %v447 = vadd.f32 0.0, %v446
      %v448 = vpop.f32.mrf.mxu0
      %v449 = vadd.f32 0.0, %v448
      %450 = vdwg.mxu0
      %452 = vset.pattern.permute.xlu0 0
      %453 = vperm.xlu0 %452, %v311
      %v454 = vpop.permute.xlu0 %453
      %457 = vset.pattern.permute.xlu0 0
      %458 = vperm.xlu0 %457, %v312
      %v459 = vpop.permute.xlu0 %458
      %v461 = vmul.f32 %v441, %v454
      %v462 = vmul.f32 %v443, %v454
      %v463 = vmul.f32 %v447, %v459
      %v464 = vmul.f32 %v449, %v459
      %466 = vset.pattern.permute.xlu0 0
      %467 = vperm.xlu0 %466, %v313
      %v468 = vpop.permute.xlu0 %467
      %471 = vset.pattern.permute.xlu0 0
      %472 = vperm.xlu0 %471, %v314
      %v473 = vpop.permute.xlu0 %472
      %v475 = vadd.f32 %v461, %v468
      %v476 = vadd.f32 %v462, %v468
      %v477 = vadd.f32 %v463, %v473
      %v478 = vadd.f32 %v464, %v473
      %v479 = vmax.f32 %v475, 0.0
      %v480 = vmax.f32 %v476, 0.0
      %v481 = vmax.f32 %v477, 0.0
      %v482 = vmax.f32 %v478, 0.0
      %483 = vrot.lane.b32.xlu0 %v479, 17
      %v484 = vpop.permute.xlu0 %483
      %485 = vrot.lane.b32.xlu0 %v481, 17
      %v486 = vpop.permute.xlu0 %485
      %487 = vrot.lane.b32.xlu0 %v480, 17
      %v488 = vpop.permute.xlu0 %487
      %489 = vrot.lane.b32.xlu0 %v482, 17
      %v490 = vpop.permute.xlu0 %489
      %v491 = vlaneseq
      %v492 = vand.u32 %v491, 127
      %vm493 = vcmp.lt.s32.totalorder %v492, 17
      %v494 = vsel %vm493, %v484, %v488
      %v495 = vsel %vm493, %v486, %v490
      %v496 = vsel %vm493, %v488, %v484
      %v497 = vsel %vm493, %v490, %v486
      %v499 = vlaneseq
      %v500 = vshrl.u32 %v499, 7
      %v501 = vsub.s32 0, %v500
      %v502 = vrot.slane %v315, %v501
      %v503 = vlaneseq
      %v504 = vshrl.u32 %v503, 7
      %v505 = vsub.s32 1, %v504
      %v506 = vrot.slane %v315, %v505
      %v509 = vmul.f32 %v496, %v502
      %v510 = vmul.f32 %v494, %v506
      %v511 = vmul.f32 %v497, %v502
      %v512 = vmul.f32 %v495, %v506
      %513 = vrot.lane.b32.xlu0 %v479, 16
      %v514 = vpop.permute.xlu0 %513
      %515 = vrot.lane.b32.xlu0 %v481, 16
      %v516 = vpop.permute.xlu0 %515
      %517 = vrot.lane.b32.xlu0 %v480, 16
      %v518 = vpop.permute.xlu0 %517
      %519 = vrot.lane.b32.xlu0 %v482, 16
      %v520 = vpop.permute.xlu0 %519
      %vm521 = vcmp.lt.s32.totalorder %v492, 16
      %v522 = vsel %vm521, %v514, %v518
      %v523 = vsel %vm521, %v516, %v520
      %v524 = vsel %vm521, %v518, %v514
      %v525 = vsel %vm521, %v520, %v516
      %v527 = vlaneseq
      %v528 = vshrl.u32 %v527, 7
      %v529 = vsub.s32 0, %v528
      %v530 = vrot.slane %v317, %v529
      %v531 = vlaneseq
      %v532 = vshrl.u32 %v531, 7
      %v533 = vsub.s32 1, %v532
      %v534 = vrot.slane %v317, %v533
      %v537 = vmul.f32 %v524, %v530
      %v538 = vmul.f32 %v522, %v534
      %v539 = vmul.f32 %v525, %v530
      %v540 = vmul.f32 %v523, %v534
      %541 = vrot.lane.b32.xlu0 %v479, 15
      %v542 = vpop.permute.xlu0 %541
      %543 = vrot.lane.b32.xlu0 %v481, 15
      %v544 = vpop.permute.xlu0 %543
      %545 = vrot.lane.b32.xlu0 %v480, 15
      %v546 = vpop.permute.xlu0 %545
      %547 = vrot.lane.b32.xlu0 %v482, 15
      %v548 = vpop.permute.xlu0 %547
      %vm549 = vcmp.lt.s32.totalorder %v492, 15
      %v550 = vsel %vm549, %v542, %v546
      %v551 = vsel %vm549, %v544, %v548
      %v552 = vsel %vm549, %v546, %v542
      %v553 = vsel %vm549, %v548, %v544
      %v555 = vlaneseq
      %v556 = vshrl.u32 %v555, 7
      %v557 = vsub.s32 0, %v556
      %v558 = vrot.slane %v319, %v557
      %v559 = vlaneseq
      %v560 = vshrl.u32 %v559, 7
      %v561 = vsub.s32 1, %v560
      %v562 = vrot.slane %v319, %v561
      %v565 = vmul.f32 %v552, %v558
      %v566 = vmul.f32 %v550, %v562
      %v567 = vmul.f32 %v553, %v558
      %v568 = vmul.f32 %v551, %v562
      %569 = vrot.lane.b32.xlu0 %v479, 1
      %v570 = vpop.permute.xlu0 %569
      %571 = vrot.lane.b32.xlu0 %v481, 1
      %v572 = vpop.permute.xlu0 %571
      %573 = vrot.lane.b32.xlu0 %v480, 1
      %v574 = vpop.permute.xlu0 %573
      %575 = vrot.lane.b32.xlu0 %v482, 1
      %v576 = vpop.permute.xlu0 %575
      %vm577 = vcmp.lt.s32.totalorder %v492, 1
      %v578 = vsel %vm577, %v570, %v574
      %v579 = vsel %vm577, %v572, %v576
      %v580 = vsel %vm577, %v574, %v570
      %v581 = vsel %vm577, %v576, %v572
      %v583 = vlaneseq
      %v584 = vshrl.u32 %v583, 7
      %v585 = vsub.s32 0, %v584
      %v586 = vrot.slane %v321, %v585
      %v587 = vlaneseq
      %v588 = vshrl.u32 %v587, 7
      %v589 = vsub.s32 1, %v588
      %v590 = vrot.slane %v321, %v589
      %v593 = vmul.f32 %v580, %v586
      %v594 = vmul.f32 %v578, %v590
      %v595 = vmul.f32 %v581, %v586
      %v596 = vmul.f32 %v579, %v590
      %v598 = vlaneseq
      %v599 = vshrl.u32 %v598, 7
      %v600 = vsub.s32 0, %v599
      %v601 = vrot.slane %v323, %v600
      %v602 = vlaneseq
      %v603 = vshrl.u32 %v602, 7
      %v604 = vsub.s32 1, %v603
      %v605 = vrot.slane %v323, %v604
      %v608 = vmul.f32 %v479, %v601
      %v609 = vmul.f32 %v480, %v605
      %v610 = vmul.f32 %v481, %v601
      %v611 = vmul.f32 %v482, %v605
      %612 = vrot.lane.b32.xlu0 %v479, 127
      %v613 = vpop.permute.xlu0 %612
      %614 = vrot.lane.b32.xlu0 %v481, 127
      %v615 = vpop.permute.xlu0 %614
      %616 = vrot.lane.b32.xlu0 %v480, 127
      %v617 = vpop.permute.xlu0 %616
      %618 = vrot.lane.b32.xlu0 %v482, 127
      %v619 = vpop.permute.xlu0 %618
      %vm620 = vcmp.lt.s32.totalorder %v492, 127
      %v621 = vsel %vm620, %v613, %v617
      %v622 = vsel %vm620, %v615, %v619
      %v623 = vsel %vm620, %v617, %v613
      %v624 = vsel %vm620, %v619, %v615
      %v626 = vlaneseq
      %v627 = vshrl.u32 %v626, 7
      %v628 = vsub.s32 0, %v627
      %v629 = vrot.slane %v325, %v628
      %v630 = vlaneseq
      %v631 = vshrl.u32 %v630, 7
      %v632 = vsub.s32 1, %v631
      %v633 = vrot.slane %v325, %v632
      %v636 = vmul.f32 %v621, %v629
      %v637 = vmul.f32 %v623, %v633
      %v638 = vmul.f32 %v622, %v629
      %v639 = vmul.f32 %v624, %v633
      %640 = vrot.lane.b32.xlu0 %v479, 113
      %v641 = vpop.permute.xlu0 %640
      %642 = vrot.lane.b32.xlu0 %v481, 113
      %v643 = vpop.permute.xlu0 %642
      %644 = vrot.lane.b32.xlu0 %v480, 113
      %v645 = vpop.permute.xlu0 %644
      %646 = vrot.lane.b32.xlu0 %v482, 113
      %v647 = vpop.permute.xlu0 %646
      %vm648 = vcmp.lt.s32.totalorder %v492, 113
      %v649 = vsel %vm648, %v641, %v645
      %v650 = vsel %vm648, %v643, %v647
      %v651 = vsel %vm648, %v645, %v641
      %v652 = vsel %vm648, %v647, %v643
      %v654 = vlaneseq
      %v655 = vshrl.u32 %v654, 7
      %v656 = vsub.s32 0, %v655
      %v657 = vrot.slane %v327, %v656
      %v658 = vlaneseq
      %v659 = vshrl.u32 %v658, 7
      %v660 = vsub.s32 1, %v659
      %v661 = vrot.slane %v327, %v660
      %v664 = vmul.f32 %v649, %v657
      %v665 = vmul.f32 %v651, %v661
      %v666 = vmul.f32 %v650, %v657
      %v667 = vmul.f32 %v652, %v661
      %668 = vrot.lane.b32.xlu0 %v479, 112
      %v669 = vpop.permute.xlu0 %668
      %670 = vrot.lane.b32.xlu0 %v481, 112
      %v671 = vpop.permute.xlu0 %670
      %672 = vrot.lane.b32.xlu0 %v480, 112
      %v673 = vpop.permute.xlu0 %672
      %674 = vrot.lane.b32.xlu0 %v482, 112
      %v675 = vpop.permute.xlu0 %674
      %vm676 = vcmp.lt.s32.totalorder %v492, 112
      %v677 = vsel %vm676, %v669, %v673
      %v678 = vsel %vm676, %v671, %v675
      %v679 = vsel %vm676, %v673, %v669
      %v680 = vsel %vm676, %v675, %v671
      %v682 = vlaneseq
      %v683 = vshrl.u32 %v682, 7
      %v684 = vsub.s32 0, %v683
      %v685 = vrot.slane %v329, %v684
      %v686 = vlaneseq
      %v687 = vshrl.u32 %v686, 7
      %v688 = vsub.s32 1, %v687
      %v689 = vrot.slane %v329, %v688
      %v692 = vmul.f32 %v677, %v685
      %v693 = vmul.f32 %v679, %v689
      %v694 = vmul.f32 %v678, %v685
      %v695 = vmul.f32 %v680, %v689
      %696 = vrot.lane.b32.xlu0 %v479, 111
      %v697 = vpop.permute.xlu0 %696
      %698 = vrot.lane.b32.xlu0 %v481, 111
      %v699 = vpop.permute.xlu0 %698
      %700 = vrot.lane.b32.xlu0 %v480, 111
      %v701 = vpop.permute.xlu0 %700
      %702 = vrot.lane.b32.xlu0 %v482, 111
      %v703 = vpop.permute.xlu0 %702
      %vm704 = vcmp.lt.s32.totalorder %v492, 111
      %v705 = vsel %vm704, %v697, %v701
      %v706 = vsel %vm704, %v699, %v703
      %v707 = vsel %vm704, %v701, %v697
      %v708 = vsel %vm704, %v703, %v699
      %v710 = vlaneseq
      %v711 = vshrl.u32 %v710, 7
      %v712 = vsub.s32 0, %v711
      %v713 = vrot.slane %v331, %v712
      %v714 = vlaneseq
      %v715 = vshrl.u32 %v714, 7
      %v716 = vsub.s32 1, %v715
      %v717 = vrot.slane %v331, %v716
      %v720 = vmul.f32 %v705, %v713
      %v721 = vmul.f32 %v707, %v717
      %v722 = vmul.f32 %v706, %v713
      %v723 = vmul.f32 %v708, %v717
      %v725 = vcombine.high %v308, %v308
      %vm726 = vcmask 130048
      %v727 = vsel %vm726, %v725, 0
      %729 = vmatprep.subr.mxu0 %v695
      %730 = vmatpush1.msra.mxu0 %v694
      %731 = vmatprep.subr.mxu0 %v693
      %732 = vmatpush1.msra.mxu0 %v692
      %733 = vmatprep.subr.mxu0 %v667
      %734 = vmatpush1.msra.mxu0 %v666
      %735 = vmatprep.subr.mxu0 %v665
      %736 = vmatpush1.msra.mxu0 %v664
      %737 = vmatprep.subr.mxu0 %v639
      %738 = vmatpush1.msra.mxu0 %v638
      %739 = vmatprep.subr.mxu0 %v637
      %740 = vmatpush1.msra.mxu0 %v636
      %741 = vmatprep.subr.mxu0 %v611
      %742 = vmatpush1.msra.mxu0 %v610
      %743 = vmatprep.subr.mxu0 %v609
      %744 = vmatpush1.msra.mxu0 %v608
      %745 = vmatprep.subr.mxu0 %v596
      %746 = vmatpush1.msra.mxu0 %v595
      %747 = vmatprep.subr.mxu0 %v594
      %748 = vmatpush1.msra.mxu0 %v593
      %749 = vmatprep.subr.mxu0 %v568
      %750 = vmatpush1.msra.mxu0 %v567
      %751 = vmatprep.subr.mxu0 %v566
      %752 = vmatpush1.msra.mxu0 %v565
      %753 = vmatprep.subr.mxu0 %v540
      %754 = vmatpush1.msra.mxu0 %v539
      %755 = vmatprep.subr.mxu0 %v538
      %756 = vmatpush1.msra.mxu0 %v537
      %757 = vmatprep.subr.mxu0 %v512
      %758 = vmatpush1.msra.mxu0 %v511
      %759 = vmatprep.subr.mxu0 %v510
      %760 = vmatpush1.msra.mxu0 %v509
      %761 = vmatprep.subr.mxu0 0.0
      %762 = vmatpush2.msra.mxu0 0.0
      %763 = vmatprep.subr.mxu0 0.0
      %764 = vmatpush2.msra.mxu0 0.0
      %765 = vmatprep.subr.mxu0 0.0
      %766 = vmatpush2.msra.mxu0 0.0
      %767 = vmatprep.subr.mxu0 0.0
      %768 = vmatpush2.msra.mxu0 0.0
      %769 = vmatprep.subr.mxu0 0.0
      %770 = vmatpush2.msra.mxu0 0.0
      %771 = vmatprep.subr.mxu0 0.0
      %772 = vmatpush2.msra.mxu0 0.0
      %773 = vmatprep.subr.mxu0 0.0
      %774 = vmatpush2.msra.mxu0 0.0
      %775 = vmatprep.subr.mxu0 0.0
      %776 = vmatpush2.msra.mxu0 0.0
      %777 = vmatprep.subr.mxu0 0.0
      %778 = vmatpush2.msra.mxu0 0.0
      %779 = vmatprep.subr.mxu0 0.0
      %780 = vmatpush2.msra.mxu0 0.0
      %781 = vmatprep.subr.mxu0 0.0
      %782 = vmatpush2.msra.mxu0 0.0
      %783 = vmatprep.subr.mxu0 0.0
      %784 = vmatpush2.msra.mxu0 0.0
      %785 = vmatprep.subr.mxu0 0.0
      %786 = vmatpush2.msra.mxu0 0.0
      %787 = vmatprep.subr.mxu0 0.0
      %788 = vmatpush2.msra.mxu0 0.0
      %789 = vmatprep.subr.mxu0 %v723
      %790 = vmatpush2.msra.mxu0 %v722
      %791 = vmatprep.subr.mxu0 %v721
      %792 = vmatpush2.msra.mxu0 %v720
      %793 = vmatprep.mubr.f32.mxu0 %v727
      %794 = vmatmul.mubr.f32.gmra.mxu0 %v308
      %v795 = vpop.f32.mrf.mxu0
      %v796 = vadd.f32 0.0, %v795
      %v797 = vpop.f32.mrf.mxu0
      %v798 = vadd.f32 0.0, %v797
      %799 = vdwg.mxu0
      %v801 = vcombine.high %v332, %v332
      %803 = vst [vmem:[%s305] sm:$0xf] %v332
      %804 = vst [vmem:[%s305 + $0x8] sm:$0xf] %v801
      %v807 = vrot.slane %v796, 4
      %v808 = vrot.slane %v798, 4
      %811 = vst [vmem:[%s305] sm:$0xf0] %v807
      %812 = vst [vmem:[%s305 + $0x8] sm:$0xf0] %v808
      %p813 = scmp.lt.s32.totalorder %s19, 1
      %s814 = scalar_select %p813, %s19, 1
      %s815 = smul.addr %s814, 2
      %s816 = smul.addr %s815, 8
      %s817 = scalar_lea.vmem %s8, %s816
      // Predicated region
      $region53: #{densenet_basic_block.3} parent=51 // pred_check
        %p818 = pneg %p210
      $region54: #{densenet_basic_block.3} parent=51 // pred_check_branch
        %820 = sbr.rel (%p818) target = $region56
      $region55: #{densenet_basic_block.3} parent=51 // pred_region
        _
      $region56: #{densenet_basic_block.3} parent=51 // pred_fallthru
        _
    $region52: #{densenet_basic_block.3} parent=5 // pred_fallthru
      _
    %p821 = scmp.le.s32.totalorder 2, %s14
    // Predicated region
    $region57: #{densenet_basic_block.3} parent=5 // pred_check
      %p822 = pneg %p821
    $region58: #{densenet_basic_block.3} parent=5 // pred_check_branch
      %824 = sbr.rel (%p822) target = $region60
    $region59: #{densenet_basic_block.3} parent=5 // pred_region
      %s825 = ssub.s32 %s14, 2
      // Predicated region
      $region61: #{densenet_basic_block.3} parent=59 // pred_check
        %p826 = pneg %p216
      $region62: #{densenet_basic_block.3} parent=59 // pred_check_branch
        %828 = sbr.rel (%p826) target = $region64
      $region63: #{densenet_basic_block.3} parent=59 // pred_region
        %p829 = scmp.lt.s32.totalorder %s20, 1
        %s830 = scalar_select %p829, %s20, 1
        %s831 = smul.addr %s830, 2
        %s832 = smul.addr %s831, 8
        %s833 = scalar_lea.vmem %s8, %s832
      $region64: #{densenet_basic_block.3} parent=59 // pred_fallthru
        _
    $region60: #{densenet_basic_block.3} parent=5 // pred_fallthru
      _
  $region6: #{densenet_basic_block.3} parent=0 // loop_footer
    %s18 = sadd.s32 1, %s14
  $region7: #{densenet_basic_block.3} parent=0 // loop_footer_branch
    %13 = sbr.rel target = $region3
  $region8: #{densenet_basic_block.3} parent=0 // loop_exit
    _

</llo_original>
